<compile_context>
chip_gen: v6e
topology: v6e:2x2x1
jax: 0.10.0
libtpu: 0.0.40
codegen_flags: <defaults>
</compile_context>

<pallas_src>
import jax
import jax.numpy as jnp
from jax import lax
from jax.experimental import pallas as pl
from jax.experimental.pallas import tpu as pltpu

IN_DIM = 88      # PyTorch input feature count
IN_PAD = 128     # zero-padded feature dim (lane aligned)
HID = 256        # hidden / output width
TM = 256         # batch rows per grid step
SUB = 128        # batch rows per inner sub-block


def dnn_audio_kernel(x_ref, w1_ref, b1_ref, w2_ref, b2_ref,
                     w3_ref, b3_ref, w4_ref, b4_ref, o_ref):
    """Runs the whole 4-layer MLP for one (TM, IN_PAD) batch tile."""

    def sub_block(s, carry):
        r = pl.multiple_of(s * SUB, SUB)
        x = x_ref[pl.ds(r, SUB), :].astype(jnp.bfloat16)

        h = jnp.dot(x, w1_ref[...], preferred_element_type=jnp.float32)
        h = jnp.maximum(h + b1_ref[...], 0.0)

        h = jnp.dot(h.astype(jnp.bfloat16), w2_ref[...],
                    preferred_element_type=jnp.float32)
        h = jnp.maximum(h + b2_ref[...], 0.0)

        h = jnp.dot(h.astype(jnp.bfloat16), w3_ref[...],
                    preferred_element_type=jnp.float32)
        h = jnp.maximum(h + b3_ref[...], 0.0)

        h = jnp.dot(h.astype(jnp.bfloat16), w4_ref[...],
                    preferred_element_type=jnp.float32)
        o_ref[pl.ds(r, SUB), :] = (h + b4_ref[...]).astype(o_ref.dtype)
        return carry

    # Short fixed trip count -> fully unrolled for LLO scheduler visibility.
    lax.fori_loop(0, TM // SUB, sub_block, 0, unroll=True)


@jax.jit
def dnn_audio_forward(x, params):
    """x: (B, 88) float32. params: w1..w4 (in,out) f32, b1..b4 (1,out) f32."""
    B = x.shape[0]
    B_pad = ((B + TM - 1) // TM) * TM

    # Pad batch to a TM multiple and features 88 -> 128 (zeros are exact).
    x_p = jnp.pad(x.astype(jnp.float32),
                  ((0, B_pad - B), (0, IN_PAD - IN_DIM)))

    # bf16 weights (pad w1's input rows to match the padded features).
    w1 = jnp.pad(params["w1"],
                 ((0, IN_PAD - IN_DIM), (0, 0))).astype(jnp.bfloat16)
    w2 = params["w2"].astype(jnp.bfloat16)
    w3 = params["w3"].astype(jnp.bfloat16)
    w4 = params["w4"].astype(jnp.bfloat16)
    b1 = params["b1"].astype(jnp.float32)
    b2 = params["b2"].astype(jnp.float32)
    b3 = params["b3"].astype(jnp.float32)
    b4 = params["b4"].astype(jnp.float32)

    # Untiled, VMEM-resident operands (constant across the grid -> no
    # double-buffering / per-step DMA).
    resident = pl.BlockSpec(memory_space=pltpu.MemorySpace.VMEM)

    out = pl.pallas_call(
        dnn_audio_kernel,
        out_shape=jax.ShapeDtypeStruct((B_pad, HID), jnp.float32),
        grid_spec=pltpu.PrefetchScalarGridSpec(
            num_scalar_prefetch=0,
            grid=(B_pad // TM,),
            in_specs=[
                pl.BlockSpec((TM, IN_PAD), lambda i: (i, 0)),  # x tile
                resident, resident,                            # layer1 w, b
                resident, resident,                            # layer2 w, b
                resident, resident,                            # layer3 w, b
                resident, resident,                            # layer4 w, b
            ],
            out_specs=pl.BlockSpec((TM, HID), lambda i: (i, 0)),
        ),
        compiler_params=pltpu.CompilerParams(
            dimension_semantics=("parallel",)),
    )(x_p, w1, b1, w2, b2, w3, b3, w4, b4)

    return out[:B]


def init_params(key):
    """Deterministic init mimicking nn.Linear default (uniform +-1/sqrt(fan_in))."""
    dims = [(IN_DIM, HID), (HID, HID), (HID, HID), (HID, HID)]
    params = {}
    keys = jax.random.split(key, 2 * len(dims))
    for idx, (fan_in, fan_out) in enumerate(dims):
        bound = 1.0 / jnp.sqrt(fan_in)
        w = jax.random.uniform(keys[2 * idx], (fan_in, fan_out),
                               jnp.float32, -bound, bound)
        b = jax.random.uniform(keys[2 * idx + 1], (1, fan_out),
                               jnp.float32, -bound, bound)
        params[f"w{idx + 1}"] = w
        params[f"b{idx + 1}"] = b
    return params


def reference_forward_f32(x, params):
    """Pure-f32 reference (PyTorch semantics)."""
    h = jnp.maximum(x @ params["w1"] + params["b1"], 0.0)
    h = jnp.maximum(h @ params["w2"] + params["b2"], 0.0)
    h = jnp.maximum(h @ params["w3"] + params["b3"], 0.0)
    return h @ params["w4"] + params["b4"]


def reference_forward_bf16(x, params):
    """Reference that mirrors the kernel's numerics (bf16 inputs, f32 accum)."""
    def lin(h, w, b):
        return jnp.dot(h.astype(jnp.bfloat16), w.astype(jnp.bfloat16),
                       preferred_element_type=jnp.float32) + b
    h = jnp.maximum(lin(x, params["w1"], params["b1"]), 0.0)
    h = jnp.maximum(lin(h, params["w2"], params["b2"]), 0.0)
    h = jnp.maximum(lin(h, params["w3"], params["b3"]), 0.0)
    return lin(h, params["w4"], params["b4"])


if __name__ == "__main__":
    key = jax.random.PRNGKey(0)
    pkey, xkey = jax.random.split(key)

    params = init_params(pkey)
    # B=300 is not a multiple of TM -> exercises batch padding (pads to 512,
    # giving a 2-step grid that can shard across both v7x TensorCores).
    B = 300
    x = jax.random.normal(xkey, (B, IN_DIM), jnp.float32)

    out = jax.block_until_ready(dnn_audio_forward(x, params))
    assert out.shape == (B, HID), out.shape

    ref_bf16 = reference_forward_bf16(x, params)
    ref_f32 = reference_forward_f32(x, params)

    # Tight check vs a reference with matching (bf16-in / f32-accum) numerics.
    assert jnp.allclose(out, ref_bf16, atol=1e-3, rtol=1e-3), \
        "mismatch vs bf16-matched JAX reference"
    # Loose sanity check vs the exact f32 PyTorch-semantics reference.
    assert float(jnp.max(jnp.abs(out - ref_f32))) < 5e-2, \
        "mismatch vs f32 JAX reference"

    print("KERNEL_OK")
</pallas_src>

<mosaic_0001>
module attributes {stable_mosaic.version = 11 : i64} {
  func.func @dnn_audio_kernel(%arg0: i32, %arg1: memref<256x128xf32, #tpu.memory_space<vmem>>, %arg2: memref<128x256xbf16, #tpu.memory_space<vmem>>, %arg3: memref<1x256xf32, #tpu.memory_space<vmem>>, %arg4: memref<256x256xbf16, #tpu.memory_space<vmem>>, %arg5: memref<1x256xf32, #tpu.memory_space<vmem>>, %arg6: memref<256x256xbf16, #tpu.memory_space<vmem>>, %arg7: memref<1x256xf32, #tpu.memory_space<vmem>>, %arg8: memref<256x256xbf16, #tpu.memory_space<vmem>>, %arg9: memref<1x256xf32, #tpu.memory_space<vmem>>, %arg10: memref<256x256xf32, #tpu.memory_space<vmem>>) attributes {dimension_semantics = [#tpu.dimension_semantics<parallel>], iteration_bounds = array<i64: 2>, scalar_prefetch = 0 : i64, scratch_operands = 0 : i64, tpu.core_type = #tpu.core_type<tc>, window_params = [{transform_indices = @transform_0, window_bounds = array<i64: 256, 128>}, {pipeline_mode = #tpu.pipeline_mode<synchronous>, transform_indices = @transform_1, window_bounds = array<i64: 128, 256>}, {pipeline_mode = #tpu.pipeline_mode<synchronous>, transform_indices = @transform_2, window_bounds = array<i64: 1, 256>}, {pipeline_mode = #tpu.pipeline_mode<synchronous>, transform_indices = @transform_3, window_bounds = array<i64: 256, 256>}, {pipeline_mode = #tpu.pipeline_mode<synchronous>, transform_indices = @transform_4, window_bounds = array<i64: 1, 256>}, {pipeline_mode = #tpu.pipeline_mode<synchronous>, transform_indices = @transform_5, window_bounds = array<i64: 256, 256>}, {pipeline_mode = #tpu.pipeline_mode<synchronous>, transform_indices = @transform_6, window_bounds = array<i64: 1, 256>}, {pipeline_mode = #tpu.pipeline_mode<synchronous>, transform_indices = @transform_7, window_bounds = array<i64: 256, 256>}, {pipeline_mode = #tpu.pipeline_mode<synchronous>, transform_indices = @transform_8, window_bounds = array<i64: 1, 256>}, {transform_indices = @transform_9, window_bounds = array<i64: 256, 256>}]} {
    %c0_i32 = arith.constant 0 : i32
    %c128_i32 = arith.constant 128 : i32
    %0 = arith.muli %c0_i32, %c128_i32 : i32
    %1 = tpu.assume_multiple %0, 128 : i32
    %2 = arith.index_cast %1 : i32 to index
    %c0 = arith.constant 0 : index
    %3 = vector.load %arg1[%2, %c0] : memref<256x128xf32, #tpu.memory_space<vmem>>, vector<128x128xf32>
    %4 = arith.truncf %3 : vector<128x128xf32> to vector<128x128xbf16>
    %c0_0 = arith.constant 0 : index
    %c0_1 = arith.constant 0 : index
    %5 = vector.load %arg2[%c0_0, %c0_1] : memref<128x256xbf16, #tpu.memory_space<vmem>>, vector<128x256xbf16>
    %cst = arith.constant dense<0.000000e+00> : vector<128x256xf32>
    %6 = tpu.matmul %4, %5, %cst {dimension_numbers = #tpu.dot_dimension_numbers<[1], [0], [0], [1], [0, 0, 1, 1], [], []>} : vector<128x128xbf16>, vector<128x256xbf16>, vector<128x256xf32> -> vector<128x256xf32>
    %c0_2 = arith.constant 0 : index
    %c0_3 = arith.constant 0 : index
    %7 = vector.load %arg3[%c0_2, %c0_3] : memref<1x256xf32, #tpu.memory_space<vmem>>, vector<1x256xf32>
    %8 = vector.broadcast %7 : vector<1x256xf32> to vector<128x256xf32>
    %9 = arith.addf %6, %8 : vector<128x256xf32>
    %cst_4 = arith.constant 0.000000e+00 : f32
    %10 = vector.broadcast %cst_4 : f32 to vector<128x256xf32>
    %11 = arith.maximumf %9, %10 : vector<128x256xf32>
    %12 = arith.truncf %11 : vector<128x256xf32> to vector<128x256xbf16>
    %c0_5 = arith.constant 0 : index
    %c0_6 = arith.constant 0 : index
    %13 = vector.load %arg4[%c0_5, %c0_6] : memref<256x256xbf16, #tpu.memory_space<vmem>>, vector<256x256xbf16>
    %cst_7 = arith.constant dense<0.000000e+00> : vector<128x256xf32>
    %14 = tpu.matmul %12, %13, %cst_7 {dimension_numbers = #tpu.dot_dimension_numbers<[1], [0], [0], [1], [0, 0, 1, 1], [], []>} : vector<128x256xbf16>, vector<256x256xbf16>, vector<128x256xf32> -> vector<128x256xf32>
    %c0_8 = arith.constant 0 : index
    %c0_9 = arith.constant 0 : index
    %15 = vector.load %arg5[%c0_8, %c0_9] : memref<1x256xf32, #tpu.memory_space<vmem>>, vector<1x256xf32>
    %16 = vector.broadcast %15 : vector<1x256xf32> to vector<128x256xf32>
    %17 = arith.addf %14, %16 : vector<128x256xf32>
    %cst_10 = arith.constant 0.000000e+00 : f32
    %18 = vector.broadcast %cst_10 : f32 to vector<128x256xf32>
    %19 = arith.maximumf %17, %18 : vector<128x256xf32>
    %20 = arith.truncf %19 : vector<128x256xf32> to vector<128x256xbf16>
    %c0_11 = arith.constant 0 : index
    %c0_12 = arith.constant 0 : index
    %21 = vector.load %arg6[%c0_11, %c0_12] : memref<256x256xbf16, #tpu.memory_space<vmem>>, vector<256x256xbf16>
    %cst_13 = arith.constant dense<0.000000e+00> : vector<128x256xf32>
    %22 = tpu.matmul %20, %21, %cst_13 {dimension_numbers = #tpu.dot_dimension_numbers<[1], [0], [0], [1], [0, 0, 1, 1], [], []>} : vector<128x256xbf16>, vector<256x256xbf16>, vector<128x256xf32> -> vector<128x256xf32>
    %c0_14 = arith.constant 0 : index
    %c0_15 = arith.constant 0 : index
    %23 = vector.load %arg7[%c0_14, %c0_15] : memref<1x256xf32, #tpu.memory_space<vmem>>, vector<1x256xf32>
    %24 = vector.broadcast %23 : vector<1x256xf32> to vector<128x256xf32>
    %25 = arith.addf %22, %24 : vector<128x256xf32>
    %cst_16 = arith.constant 0.000000e+00 : f32
    %26 = vector.broadcast %cst_16 : f32 to vector<128x256xf32>
    %27 = arith.maximumf %25, %26 : vector<128x256xf32>
    %28 = arith.truncf %27 : vector<128x256xf32> to vector<128x256xbf16>
    %c0_17 = arith.constant 0 : index
    %c0_18 = arith.constant 0 : index
    %29 = vector.load %arg8[%c0_17, %c0_18] : memref<256x256xbf16, #tpu.memory_space<vmem>>, vector<256x256xbf16>
    %cst_19 = arith.constant dense<0.000000e+00> : vector<128x256xf32>
    %30 = tpu.matmul %28, %29, %cst_19 {dimension_numbers = #tpu.dot_dimension_numbers<[1], [0], [0], [1], [0, 0, 1, 1], [], []>} : vector<128x256xbf16>, vector<256x256xbf16>, vector<128x256xf32> -> vector<128x256xf32>
    %c0_20 = arith.constant 0 : index
    %c0_21 = arith.constant 0 : index
    %31 = vector.load %arg9[%c0_20, %c0_21] : memref<1x256xf32, #tpu.memory_space<vmem>>, vector<1x256xf32>
    %32 = vector.broadcast %31 : vector<1x256xf32> to vector<128x256xf32>
    %33 = arith.addf %30, %32 : vector<128x256xf32>
    %34 = arith.index_cast %1 : i32 to index
    %c0_22 = arith.constant 0 : index
    %35 = vector.load %arg10[%34, %c0_22] : memref<256x256xf32, #tpu.memory_space<vmem>>, vector<128x256xf32>
    tpu.vector_store %arg10[%34, %c0_22], %33 {strides = array<i32>} : memref<256x256xf32, #tpu.memory_space<vmem>>, vector<128x256xf32>,
    %c1_i32 = arith.constant 1 : i32
    %c128_i32_23 = arith.constant 128 : i32
    %36 = arith.muli %c1_i32, %c128_i32_23 : i32
    %37 = tpu.assume_multiple %36, 128 : i32
    %38 = arith.index_cast %37 : i32 to index
    %c0_24 = arith.constant 0 : index
    %39 = vector.load %arg1[%38, %c0_24] : memref<256x128xf32, #tpu.memory_space<vmem>>, vector<128x128xf32>
    %40 = arith.truncf %39 : vector<128x128xf32> to vector<128x128xbf16>
    %c0_25 = arith.constant 0 : index
    %c0_26 = arith.constant 0 : index
    %41 = vector.load %arg2[%c0_25, %c0_26] : memref<128x256xbf16, #tpu.memory_space<vmem>>, vector<128x256xbf16>
    %cst_27 = arith.constant dense<0.000000e+00> : vector<128x256xf32>
    %42 = tpu.matmul %40, %41, %cst_27 {dimension_numbers = #tpu.dot_dimension_numbers<[1], [0], [0], [1], [0, 0, 1, 1], [], []>} : vector<128x128xbf16>, vector<128x256xbf16>, vector<128x256xf32> -> vector<128x256xf32>
    %c0_28 = arith.constant 0 : index
    %c0_29 = arith.constant 0 : index
    %43 = vector.load %arg3[%c0_28, %c0_29] : memref<1x256xf32, #tpu.memory_space<vmem>>, vector<1x256xf32>
    %44 = vector.broadcast %43 : vector<1x256xf32> to vector<128x256xf32>
    %45 = arith.addf %42, %44 : vector<128x256xf32>
    %cst_30 = arith.constant 0.000000e+00 : f32
    %46 = vector.broadcast %cst_30 : f32 to vector<128x256xf32>
    %47 = arith.maximumf %45, %46 : vector<128x256xf32>
    %48 = arith.truncf %47 : vector<128x256xf32> to vector<128x256xbf16>
    %c0_31 = arith.constant 0 : index
    %c0_32 = arith.constant 0 : index
    %49 = vector.load %arg4[%c0_31, %c0_32] : memref<256x256xbf16, #tpu.memory_space<vmem>>, vector<256x256xbf16>
    %cst_33 = arith.constant dense<0.000000e+00> : vector<128x256xf32>
    %50 = tpu.matmul %48, %49, %cst_33 {dimension_numbers = #tpu.dot_dimension_numbers<[1], [0], [0], [1], [0, 0, 1, 1], [], []>} : vector<128x256xbf16>, vector<256x256xbf16>, vector<128x256xf32> -> vector<128x256xf32>
    %c0_34 = arith.constant 0 : index
    %c0_35 = arith.constant 0 : index
    %51 = vector.load %arg5[%c0_34, %c0_35] : memref<1x256xf32, #tpu.memory_space<vmem>>, vector<1x256xf32>
    %52 = vector.broadcast %51 : vector<1x256xf32> to vector<128x256xf32>
    %53 = arith.addf %50, %52 : vector<128x256xf32>
    %cst_36 = arith.constant 0.000000e+00 : f32
    %54 = vector.broadcast %cst_36 : f32 to vector<128x256xf32>
    %55 = arith.maximumf %53, %54 : vector<128x256xf32>
    %56 = arith.truncf %55 : vector<128x256xf32> to vector<128x256xbf16>
    %c0_37 = arith.constant 0 : index
    %c0_38 = arith.constant 0 : index
    %57 = vector.load %arg6[%c0_37, %c0_38] : memref<256x256xbf16, #tpu.memory_space<vmem>>, vector<256x256xbf16>
    %cst_39 = arith.constant dense<0.000000e+00> : vector<128x256xf32>
    %58 = tpu.matmul %56, %57, %cst_39 {dimension_numbers = #tpu.dot_dimension_numbers<[1], [0], [0], [1], [0, 0, 1, 1], [], []>} : vector<128x256xbf16>, vector<256x256xbf16>, vector<128x256xf32> -> vector<128x256xf32>
    %c0_40 = arith.constant 0 : index
    %c0_41 = arith.constant 0 : index
    %59 = vector.load %arg7[%c0_40, %c0_41] : memref<1x256xf32, #tpu.memory_space<vmem>>, vector<1x256xf32>
    %60 = vector.broadcast %59 : vector<1x256xf32> to vector<128x256xf32>
    %61 = arith.addf %58, %60 : vector<128x256xf32>
    %cst_42 = arith.constant 0.000000e+00 : f32
    %62 = vector.broadcast %cst_42 : f32 to vector<128x256xf32>
    %63 = arith.maximumf %61, %62 : vector<128x256xf32>
    %64 = arith.truncf %63 : vector<128x256xf32> to vector<128x256xbf16>
    %c0_43 = arith.constant 0 : index
    %c0_44 = arith.constant 0 : index
    %65 = vector.load %arg8[%c0_43, %c0_44] : memref<256x256xbf16, #tpu.memory_space<vmem>>, vector<256x256xbf16>
    %cst_45 = arith.constant dense<0.000000e+00> : vector<128x256xf32>
    %66 = tpu.matmul %64, %65, %cst_45 {dimension_numbers = #tpu.dot_dimension_numbers<[1], [0], [0], [1], [0, 0, 1, 1], [], []>} : vector<128x256xbf16>, vector<256x256xbf16>, vector<128x256xf32> -> vector<128x256xf32>
    %c0_46 = arith.constant 0 : index
    %c0_47 = arith.constant 0 : index
    %67 = vector.load %arg9[%c0_46, %c0_47] : memref<1x256xf32, #tpu.memory_space<vmem>>, vector<1x256xf32>
    %68 = vector.broadcast %67 : vector<1x256xf32> to vector<128x256xf32>
    %69 = arith.addf %66, %68 : vector<128x256xf32>
    %70 = arith.index_cast %37 : i32 to index
    %c0_48 = arith.constant 0 : index
    %71 = vector.load %arg10[%70, %c0_48] : memref<256x256xf32, #tpu.memory_space<vmem>>, vector<128x256xf32>
    tpu.vector_store %arg10[%70, %c0_48], %69 {strides = array<i32>} : memref<256x256xf32, #tpu.memory_space<vmem>>, vector<128x256xf32>,
    %c2_i32 = arith.constant 2 : i32
    return
  }
  func.func @transform_0(%arg0: i32) -> (i32, i32) {
    %c0_i32 = arith.constant 0 : i32
    %c0_i32_0 = arith.constant 0 : i32
    return %arg0, %c0_i32 : i32, i32
  }
  func.func @transform_1(%arg0: i32) -> (i32, i32) {
    %c0_i32 = arith.constant 0 : i32
    %c0_i32_0 = arith.constant 0 : i32
    %c0_i32_1 = arith.constant 0 : i32
    return %c0_i32, %c0_i32_0 : i32, i32
  }
  func.func @transform_2(%arg0: i32) -> (i32, i32) {
    %c0_i32 = arith.constant 0 : i32
    %c0_i32_0 = arith.constant 0 : i32
    %c0_i32_1 = arith.constant 0 : i32
    return %c0_i32, %c0_i32_0 : i32, i32
  }
  func.func @transform_3(%arg0: i32) -> (i32, i32) {
    %c0_i32 = arith.constant 0 : i32
    %c0_i32_0 = arith.constant 0 : i32
    %c0_i32_1 = arith.constant 0 : i32
    return %c0_i32, %c0_i32_0 : i32, i32
  }
  func.func @transform_4(%arg0: i32) -> (i32, i32) {
    %c0_i32 = arith.constant 0 : i32
    %c0_i32_0 = arith.constant 0 : i32
    %c0_i32_1 = arith.constant 0 : i32
    return %c0_i32, %c0_i32_0 : i32, i32
  }
  func.func @transform_5(%arg0: i32) -> (i32, i32) {
    %c0_i32 = arith.constant 0 : i32
    %c0_i32_0 = arith.constant 0 : i32
    %c0_i32_1 = arith.constant 0 : i32
    return %c0_i32, %c0_i32_0 : i32, i32
  }
  func.func @transform_6(%arg0: i32) -> (i32, i32) {
    %c0_i32 = arith.constant 0 : i32
    %c0_i32_0 = arith.constant 0 : i32
    %c0_i32_1 = arith.constant 0 : i32
    return %c0_i32, %c0_i32_0 : i32, i32
  }
  func.func @transform_7(%arg0: i32) -> (i32, i32) {
    %c0_i32 = arith.constant 0 : i32
    %c0_i32_0 = arith.constant 0 : i32
    %c0_i32_1 = arith.constant 0 : i32
    return %c0_i32, %c0_i32_0 : i32, i32
  }
  func.func @transform_8(%arg0: i32) -> (i32, i32) {
    %c0_i32 = arith.constant 0 : i32
    %c0_i32_0 = arith.constant 0 : i32
    %c0_i32_1 = arith.constant 0 : i32
    return %c0_i32, %c0_i32_0 : i32, i32
  }
  func.func @transform_9(%arg0: i32) -> (i32, i32) {
    %c0_i32 = arith.constant 0 : i32
    %c0_i32_0 = arith.constant 0 : i32
    return %arg0, %c0_i32 : i32, i32
  }
}

</mosaic_0001>

<llo_original>
// kernel: dnn_audio_forward.1
$region0: #{dnn_audio_forward.1}
  #allocation0 [shape = 'u32[]', space=smem, size = 0x4, offset = 0x4, fixed_abs, tag = 'smem constant byte address 0x4 - core index']
  #allocation1 [shape = 'u32[144,128]{1,0:T(1,128)}', space=vmem, size = 0x12000, scoped, tag = 'internal scratch']
  %s0 = inlined_call_operand.vmem [shape: f32[512,128], index: 0, kind: input, shape index: {}]
  %s1 = inlined_call_operand.vmem [shape: bf16[128,256], index: 1, kind: input, shape index: {}]
  %s2 = inlined_call_operand.vmem [shape: f32[1,256], index: 2, kind: input, shape index: {}]
  %s3 = inlined_call_operand.vmem [shape: bf16[256,256], index: 3, kind: input, shape index: {}]
  %s4 = inlined_call_operand.vmem [shape: f32[1,256], index: 4, kind: input, shape index: {}]
  %s5 = inlined_call_operand.vmem [shape: bf16[256,256], index: 5, kind: input, shape index: {}]
  %s6 = inlined_call_operand.vmem [shape: f32[1,256], index: 6, kind: input, shape index: {}]
  %s7 = inlined_call_operand.vmem [shape: bf16[256,256], index: 7, kind: input, shape index: {}]
  %s8 = inlined_call_operand.vmem [shape: f32[1,256], index: 8, kind: input, shape index: {}]
  %s9 = inlined_call_operand.vmem [shape: f32[512,256], index: 9, kind: output, shape index: {}]
  %s10 = sld [smem:[#allocation0]]
  $region69: #{dnn_audio_forward.1} parent=0
    _
  %s12 = ssub.s32 1, %s10
  %s13 = scalar_select 0, %s12, %s10
  loop: start=0, step=1, limit=4
  $region2: #{dnn_audio_forward.1} parent=0 // loop_pre_header
    _
  $region3: #{dnn_audio_forward.1} parent=0 // loop_header
    %s15 = sphi 0, %s19
    %p16 = scmp.ge.s32.totalorder %s15, 4
    %s25 = sphi 0, %s27
    %s28 = sphi 0, %s25
    %s29 = sphi 0, %s28
    %s45 = sphi 0, %s29
    %s49 = sphi 0, %s49
    %s51 = sphi 0, %s49
    %s52 = sphi 0, %s51
    %s66 = sphi 0, %s52
    %s70 = sphi 0, %s70
    %s72 = sphi 0, %s70
    %s73 = sphi 0, %s72
    %s87 = sphi 0, %s73
    %s91 = sphi 0, %s91
    %s93 = sphi 0, %s91
    %s94 = sphi 0, %s93
    %s108 = sphi 0, %s94
    %s112 = sphi 0, %s112
    %s114 = sphi 0, %s112
    %s115 = sphi 0, %s114
    %s129 = sphi 0, %s115
    %s133 = sphi 0, %s133
    %s135 = sphi 0, %s133
    %s136 = sphi 0, %s135
    %s150 = sphi 0, %s136
    %s154 = sphi 0, %s154
    %s156 = sphi 0, %s154
    %s157 = sphi 0, %s156
    %s171 = sphi 0, %s157
    %s175 = sphi 0, %s175
    %s177 = sphi 0, %s175
    %s178 = sphi 0, %s177
    %s192 = sphi 0, %s178
    %s196 = sphi 0, %s196
    %s198 = sphi 0, %s196
    %s199 = sphi 0, %s198
    %s213 = sphi 0, %s199
    %s219 = sphi 0, %s221
    %s222 = sphi 0, %s219
    %s223 = sphi 0, %s222
    %s239 = sphi 0, %s223
  $region4: #{dnn_audio_forward.1} parent=0 // loop_header_branch
    %18 = sbr.rel (%p16) target = $region8
  $region5: #{dnn_audio_forward.1} parent=0 // loop_body
    %s20 = ssub.s32 %s15, 1
    %s21 = ssub.s32 %s15, 2
    %s22 = sadd.s32 %s15, 1
    %s23 = ssub.s32 %s15, %s22
    %p24 = scmp.eq.s32.totalorder %s23, 0
    %s26 = sadd.s32 %s25, 1
    %s27 = scalar_select %p24, %s25, %s26
    %p30 = pneg %p24
    %p31 = scmp.eq.s32.totalorder %s15, 1
    %p32 = por %p30, %p31
    %p33 = scmp.ne.s32.totalorder %s25, %s28
    %p34 = scmp.eq.s32.totalorder %s15, 0
    %p35 = por %p33, %p34
    %p36 = scmp.ne.s32.totalorder %s25, %s28
    %p37 = scmp.eq.s32.totalorder %s20, 1
    %p38 = por %p36, %p37
    %p39 = scmp.ne.s32.totalorder %s28, %s29
    %p40 = scmp.eq.s32.totalorder %s20, 0
    %p41 = por %p39, %p40
    %p42 = scmp.ne.s32.totalorder %s28, %s29
    %p43 = scmp.eq.s32.totalorder %s21, 1
    %p44 = por %p42, %p43
    %p46 = scmp.ne.s32.totalorder %s29, %s45
    %p47 = scmp.eq.s32.totalorder %s21, 0
    %p48 = por %p46, %p47
    %s50 = sadd.s32 %s49, 1
    %p53 = scmp.eq.s32.totalorder %s15, 1
    %p54 = scmp.ne.s32.totalorder %s49, %s51
    %p55 = scmp.eq.s32.totalorder %s15, 0
    %p56 = por %p54, %p55
    %p57 = scmp.ne.s32.totalorder %s49, %s51
    %p58 = scmp.eq.s32.totalorder %s20, 1
    %p59 = por %p57, %p58
    %p60 = scmp.ne.s32.totalorder %s51, %s52
    %p61 = scmp.eq.s32.totalorder %s20, 0
    %p62 = por %p60, %p61
    %p63 = scmp.ne.s32.totalorder %s51, %s52
    %p64 = scmp.eq.s32.totalorder %s21, 1
    %p65 = por %p63, %p64
    %p67 = scmp.ne.s32.totalorder %s52, %s66
    %p68 = scmp.eq.s32.totalorder %s21, 0
    %p69 = por %p67, %p68
    %s71 = sadd.s32 %s70, 1
    %p74 = scmp.eq.s32.totalorder %s15, 1
    %p75 = scmp.ne.s32.totalorder %s70, %s72
    %p76 = scmp.eq.s32.totalorder %s15, 0
    %p77 = por %p75, %p76
    %p78 = scmp.ne.s32.totalorder %s70, %s72
    %p79 = scmp.eq.s32.totalorder %s20, 1
    %p80 = por %p78, %p79
    %p81 = scmp.ne.s32.totalorder %s72, %s73
    %p82 = scmp.eq.s32.totalorder %s20, 0
    %p83 = por %p81, %p82
    %p84 = scmp.ne.s32.totalorder %s72, %s73
    %p85 = scmp.eq.s32.totalorder %s21, 1
    %p86 = por %p84, %p85
    %p88 = scmp.ne.s32.totalorder %s73, %s87
    %p89 = scmp.eq.s32.totalorder %s21, 0
    %p90 = por %p88, %p89
    %s92 = sadd.s32 %s91, 1
    %p95 = scmp.eq.s32.totalorder %s15, 1
    %p96 = scmp.ne.s32.totalorder %s91, %s93
    %p97 = scmp.eq.s32.totalorder %s15, 0
    %p98 = por %p96, %p97
    %p99 = scmp.ne.s32.totalorder %s91, %s93
    %p100 = scmp.eq.s32.totalorder %s20, 1
    %p101 = por %p99, %p100
    %p102 = scmp.ne.s32.totalorder %s93, %s94
    %p103 = scmp.eq.s32.totalorder %s20, 0
    %p104 = por %p102, %p103
    %p105 = scmp.ne.s32.totalorder %s93, %s94
    %p106 = scmp.eq.s32.totalorder %s21, 1
    %p107 = por %p105, %p106
    %p109 = scmp.ne.s32.totalorder %s94, %s108
    %p110 = scmp.eq.s32.totalorder %s21, 0
    %p111 = por %p109, %p110
    %s113 = sadd.s32 %s112, 1
    %p116 = scmp.eq.s32.totalorder %s15, 1
    %p117 = scmp.ne.s32.totalorder %s112, %s114
    %p118 = scmp.eq.s32.totalorder %s15, 0
    %p119 = por %p117, %p118
    %p120 = scmp.ne.s32.totalorder %s112, %s114
    %p121 = scmp.eq.s32.totalorder %s20, 1
    %p122 = por %p120, %p121
    %p123 = scmp.ne.s32.totalorder %s114, %s115
    %p124 = scmp.eq.s32.totalorder %s20, 0
    %p125 = por %p123, %p124
    %p126 = scmp.ne.s32.totalorder %s114, %s115
    %p127 = scmp.eq.s32.totalorder %s21, 1
    %p128 = por %p126, %p127
    %p130 = scmp.ne.s32.totalorder %s115, %s129
    %p131 = scmp.eq.s32.totalorder %s21, 0
    %p132 = por %p130, %p131
    %s134 = sadd.s32 %s133, 1
    %p137 = scmp.eq.s32.totalorder %s15, 1
    %p138 = scmp.ne.s32.totalorder %s133, %s135
    %p139 = scmp.eq.s32.totalorder %s15, 0
    %p140 = por %p138, %p139
    %p141 = scmp.ne.s32.totalorder %s133, %s135
    %p142 = scmp.eq.s32.totalorder %s20, 1
    %p143 = por %p141, %p142
    %p144 = scmp.ne.s32.totalorder %s135, %s136
    %p145 = scmp.eq.s32.totalorder %s20, 0
    %p146 = por %p144, %p145
    %p147 = scmp.ne.s32.totalorder %s135, %s136
    %p148 = scmp.eq.s32.totalorder %s21, 1
    %p149 = por %p147, %p148
    %p151 = scmp.ne.s32.totalorder %s136, %s150
    %p152 = scmp.eq.s32.totalorder %s21, 0
    %p153 = por %p151, %p152
    %s155 = sadd.s32 %s154, 1
    %p158 = scmp.eq.s32.totalorder %s15, 1
    %p159 = scmp.ne.s32.totalorder %s154, %s156
    %p160 = scmp.eq.s32.totalorder %s15, 0
    %p161 = por %p159, %p160
    %p162 = scmp.ne.s32.totalorder %s154, %s156
    %p163 = scmp.eq.s32.totalorder %s20, 1
    %p164 = por %p162, %p163
    %p165 = scmp.ne.s32.totalorder %s156, %s157
    %p166 = scmp.eq.s32.totalorder %s20, 0
    %p167 = por %p165, %p166
    %p168 = scmp.ne.s32.totalorder %s156, %s157
    %p169 = scmp.eq.s32.totalorder %s21, 1
    %p170 = por %p168, %p169
    %p172 = scmp.ne.s32.totalorder %s157, %s171
    %p173 = scmp.eq.s32.totalorder %s21, 0
    %p174 = por %p172, %p173
    %s176 = sadd.s32 %s175, 1
    %p179 = scmp.eq.s32.totalorder %s15, 1
    %p180 = scmp.ne.s32.totalorder %s175, %s177
    %p181 = scmp.eq.s32.totalorder %s15, 0
    %p182 = por %p180, %p181
    %p183 = scmp.ne.s32.totalorder %s175, %s177
    %p184 = scmp.eq.s32.totalorder %s20, 1
    %p185 = por %p183, %p184
    %p186 = scmp.ne.s32.totalorder %s177, %s178
    %p187 = scmp.eq.s32.totalorder %s20, 0
    %p188 = por %p186, %p187
    %p189 = scmp.ne.s32.totalorder %s177, %s178
    %p190 = scmp.eq.s32.totalorder %s21, 1
    %p191 = por %p189, %p190
    %p193 = scmp.ne.s32.totalorder %s178, %s192
    %p194 = scmp.eq.s32.totalorder %s21, 0
    %p195 = por %p193, %p194
    %s197 = sadd.s32 %s196, 1
    %p200 = scmp.eq.s32.totalorder %s15, 1
    %p201 = scmp.ne.s32.totalorder %s196, %s198
    %p202 = scmp.eq.s32.totalorder %s15, 0
    %p203 = por %p201, %p202
    %p204 = scmp.ne.s32.totalorder %s196, %s198
    %p205 = scmp.eq.s32.totalorder %s20, 1
    %p206 = por %p204, %p205
    %p207 = scmp.ne.s32.totalorder %s198, %s199
    %p208 = scmp.eq.s32.totalorder %s20, 0
    %p209 = por %p207, %p208
    %p210 = scmp.ne.s32.totalorder %s198, %s199
    %p211 = scmp.eq.s32.totalorder %s21, 1
    %p212 = por %p210, %p211
    %p214 = scmp.ne.s32.totalorder %s199, %s213
    %p215 = scmp.eq.s32.totalorder %s21, 0
    %p216 = por %p214, %p215
    %s217 = ssub.s32 %s15, %s22
    %p218 = scmp.eq.s32.totalorder %s217, 0
    %s220 = sadd.s32 %s219, 1
    %s221 = scalar_select %p218, %s219, %s220
    %p224 = pneg %p218
    %p225 = scmp.eq.s32.totalorder %s15, 1
    %p226 = por %p224, %p225
    %p227 = scmp.ne.s32.totalorder %s219, %s222
    %p228 = scmp.eq.s32.totalorder %s15, 0
    %p229 = por %p227, %p228
    %p230 = scmp.ne.s32.totalorder %s219, %s222
    %p231 = scmp.eq.s32.totalorder %s20, 1
    %p232 = por %p230, %p231
    %p233 = scmp.ne.s32.totalorder %s222, %s223
    %p234 = scmp.eq.s32.totalorder %s20, 0
    %p235 = por %p233, %p234
    %p236 = scmp.ne.s32.totalorder %s222, %s223
    %p237 = scmp.eq.s32.totalorder %s21, 1
    %p238 = por %p236, %p237
    %p240 = scmp.ne.s32.totalorder %s223, %s239
    %p241 = scmp.eq.s32.totalorder %s21, 0
    %p242 = por %p240, %p241
    %p243 = scmp.le.s32.totalorder 1, %s15
    %p244 = scmp.lt.s32.totalorder %s15, 3
    %p245 = pnand %p243, %p244
    %p246 = pneg %p245
    // Predicated region
    $region9: #{dnn_audio_forward.1} parent=5 // pred_check
      _
    $region10: #{dnn_audio_forward.1} parent=5 // pred_check_branch
      %248 = sbr.rel (%p245) target = $region12
    $region11: #{dnn_audio_forward.1} parent=5 // pred_region
      %s249 = ssub.s32 %s15, 1
      // Predicated region
      $region13: #{dnn_audio_forward.1} parent=11 // pred_check
        %p250 = pneg %p62
      $region14: #{dnn_audio_forward.1} parent=11 // pred_check_branch
        %252 = sbr.rel (%p250) target = $region16
      $region15: #{dnn_audio_forward.1} parent=11 // pred_region
        _
      $region16: #{dnn_audio_forward.1} parent=11 // pred_fallthru
        _
      // Predicated region
      $region17: #{dnn_audio_forward.1} parent=11 // pred_check
        %p253 = pneg %p83
      $region18: #{dnn_audio_forward.1} parent=11 // pred_check_branch
        %255 = sbr.rel (%p253) target = $region20
      $region19: #{dnn_audio_forward.1} parent=11 // pred_region
        _
      $region20: #{dnn_audio_forward.1} parent=11 // pred_fallthru
        _
      // Predicated region
      $region21: #{dnn_audio_forward.1} parent=11 // pred_check
        %p256 = pneg %p104
      $region22: #{dnn_audio_forward.1} parent=11 // pred_check_branch
        %258 = sbr.rel (%p256) target = $region24
      $region23: #{dnn_audio_forward.1} parent=11 // pred_region
        _
      $region24: #{dnn_audio_forward.1} parent=11 // pred_fallthru
        _
      // Predicated region
      $region25: #{dnn_audio_forward.1} parent=11 // pred_check
        %p259 = pneg %p125
      $region26: #{dnn_audio_forward.1} parent=11 // pred_check_branch
        %261 = sbr.rel (%p259) target = $region28
      $region27: #{dnn_audio_forward.1} parent=11 // pred_region
        _
      $region28: #{dnn_audio_forward.1} parent=11 // pred_fallthru
        _
      // Predicated region
      $region29: #{dnn_audio_forward.1} parent=11 // pred_check
        %p262 = pneg %p146
      $region30: #{dnn_audio_forward.1} parent=11 // pred_check_branch
        %264 = sbr.rel (%p262) target = $region32
      $region31: #{dnn_audio_forward.1} parent=11 // pred_region
        _
      $region32: #{dnn_audio_forward.1} parent=11 // pred_fallthru
        _
      // Predicated region
      $region33: #{dnn_audio_forward.1} parent=11 // pred_check
        %p265 = pneg %p167
      $region34: #{dnn_audio_forward.1} parent=11 // pred_check_branch
        %267 = sbr.rel (%p265) target = $region36
      $region35: #{dnn_audio_forward.1} parent=11 // pred_region
        _
      $region36: #{dnn_audio_forward.1} parent=11 // pred_fallthru
        _
      // Predicated region
      $region37: #{dnn_audio_forward.1} parent=11 // pred_check
        %p268 = pneg %p188
      $region38: #{dnn_audio_forward.1} parent=11 // pred_check_branch
        %270 = sbr.rel (%p268) target = $region40
      $region39: #{dnn_audio_forward.1} parent=11 // pred_region
        _
      $region40: #{dnn_audio_forward.1} parent=11 // pred_fallthru
        _
      // Predicated region
      $region41: #{dnn_audio_forward.1} parent=11 // pred_check
        %p271 = pneg %p209
      $region42: #{dnn_audio_forward.1} parent=11 // pred_check_branch
        %273 = sbr.rel (%p271) target = $region44
      $region43: #{dnn_audio_forward.1} parent=11 // pred_region
        _
      $region44: #{dnn_audio_forward.1} parent=11 // pred_fallthru
        _
    $region12: #{dnn_audio_forward.1} parent=5 // pred_fallthru
      _
    %p274 = scmp.lt.s32.totalorder %s15, 2
    // Predicated region
    $region45: #{dnn_audio_forward.1} parent=5 // pred_check
      %p275 = pneg %p274
    $region46: #{dnn_audio_forward.1} parent=5 // pred_check_branch
      %277 = sbr.rel (%p275) target = $region48
    $region47: #{dnn_audio_forward.1} parent=5 // pred_region
      // Predicated region
      $region49: #{dnn_audio_forward.1} parent=47 // pred_check
        %p278 = pneg %p35
      $region50: #{dnn_audio_forward.1} parent=47 // pred_check_branch
        %280 = sbr.rel (%p278) target = $region52
      $region51: #{dnn_audio_forward.1} parent=47 // pred_region
        %s281 = smul.u32 32, %s15
        %p282 = scmp.lt.s32.totalorder %s281, 63
        %s283 = scalar_select %p282, %s281, 63
        %s284 = smul.addr %s283, 8
        %s285 = scalar_lea.vmem %s0, %s284
        %s286 = smul.u32 32, %s15
      $region52: #{dnn_audio_forward.1} parent=47 // pred_fallthru
        _
    $region48: #{dnn_audio_forward.1} parent=5 // pred_fallthru
      _
    %p287 = scmp.le.s32.totalorder 1, %s15
    %p288 = scmp.lt.s32.totalorder %s15, 3
    %p289 = pnand %p287, %p288
    %p290 = pneg %p289
    // Predicated region
    $region53: #{dnn_audio_forward.1} parent=5 // pred_check
      _
    $region54: #{dnn_audio_forward.1} parent=5 // pred_check_branch
      %292 = sbr.rel (%p289) target = $region56
    $region55: #{dnn_audio_forward.1} parent=5 // pred_region
      %s293 = ssub.s32 %s15, 1
      %s294 = smul.u32 32, %s20
      %p295 = scmp.lt.s32.totalorder %s294, 63
      %s296 = scalar_select %p295, %s294, 63
      %s297 = smul.addr %s296, 8
      %s298 = scalar_lea.vmem %s0, %s297
      %p299 = pneg %p41
      %p300 = pneg %p38
      %p301 = pneg %p62
      %p302 = pneg %p59
      %p303 = pneg %p83
      %p304 = pneg %p80
      %p305 = pneg %p104
      %p306 = pneg %p101
      %p307 = pneg %p125
      %p308 = pneg %p122
      %p309 = pneg %p146
      %p310 = pneg %p143
      %p311 = pneg %p167
      %p312 = pneg %p164
      %p313 = pneg %p188
      %p314 = pneg %p185
      %p315 = pneg %p209
      %p316 = pneg %p206
      %p317 = pneg %p235
      %p318 = pneg %p232
      %s319 = smul.u32 32, %s20
      %p320 = scmp.lt.s32.totalorder %s319, 63
      %s321 = scalar_select %p320, %s319, 63
      %s322 = smul.addr %s321, 2
      %s323 = smul.addr %s322, 8
      %s324 = scalar_lea.vmem %s9, %s323
      %s325 = smul.u32 32, %s20
      %p326 = scmp.lt.s32.totalorder %s325, 63
      %s327 = scalar_select %p326, %s325, 63
      %s328 = smul.addr %s327, 8
      %s329 = scalar_lea.vmem %s0, %s328
      %s330 = smul.u32 32, %s20
      %s331 = smul.u32 32, %s20
      %p332 = scmp.lt.s32.totalorder %s331, 63
      %s333 = scalar_select %p332, %s331, 63
      %s334 = smul.addr %s333, 2
      %s335 = smul.addr %s334, 8
      %s336 = scalar_lea.vmem %s9, %s335
      %s337 = smul.u32 32, %s20
      %v339 = vld [vmem:[%s329] sm:$0xff]
      %v340 = vld [vmem:[%s329 + $0x8] sm:$0xff]
      %v341 = vld [vmem:[%s329 + $0x10] sm:$0xff]
      %v342 = vld [vmem:[%s329 + $0x18] sm:$0xff]
      %v343 = vld [vmem:[%s329 + $0x20] sm:$0xff]
      %v344 = vld [vmem:[%s329 + $0x28] sm:$0xff]
      %v345 = vld [vmem:[%s329 + $0x30] sm:$0xff]
      %v346 = vld [vmem:[%s329 + $0x38] sm:$0xff]
      %v347 = vld [vmem:[%s329 + $0x40] sm:$0xff]
      %v348 = vld [vmem:[%s329 + $0x48] sm:$0xff]
      %v349 = vld [vmem:[%s329 + $0x50] sm:$0xff]
      %v350 = vld [vmem:[%s329 + $0x58] sm:$0xff]
      %v351 = vld [vmem:[%s329 + $0x60] sm:$0xff]
      %v352 = vld [vmem:[%s329 + $0x68] sm:$0xff]
      %v353 = vld [vmem:[%s329 + $0x70] sm:$0xff]
      %v354 = vld [vmem:[%s329 + $0x78] sm:$0xff]
      %v355 = vpack.c.bf16 %v340, %v339
      %v356 = vpack.c.bf16 %v342, %v341
      %v357 = vpack.c.bf16 %v344, %v343
      %v358 = vpack.c.bf16 %v346, %v345
      %v359 = vpack.c.bf16 %v348, %v347
      %v360 = vpack.c.bf16 %v350, %v349
      %v361 = vpack.c.bf16 %v352, %v351
      %v362 = vpack.c.bf16 %v354, %v353
      %v363 = vld [vmem:[%s1] sm:$0xff]
      %v364 = vld [vmem:[%s1 + $0x8] sm:$0xff]
      %v365 = vld [vmem:[%s1 + $0x10] sm:$0xff]
      %v366 = vld [vmem:[%s1 + $0x18] sm:$0xff]
      %v367 = vld [vmem:[%s1 + $0x20] sm:$0xff]
      %v368 = vld [vmem:[%s1 + $0x28] sm:$0xff]
      %v369 = vld [vmem:[%s1 + $0x30] sm:$0xff]
      %v370 = vld [vmem:[%s1 + $0x38] sm:$0xff]
      %v371 = vld [vmem:[%s1 + $0x40] sm:$0xff]
      %v372 = vld [vmem:[%s1 + $0x48] sm:$0xff]
      %v373 = vld [vmem:[%s1 + $0x50] sm:$0xff]
      %v374 = vld [vmem:[%s1 + $0x58] sm:$0xff]
      %v375 = vld [vmem:[%s1 + $0x60] sm:$0xff]
      %v376 = vld [vmem:[%s1 + $0x68] sm:$0xff]
      %v377 = vld [vmem:[%s1 + $0x70] sm:$0xff]
      %v378 = vld [vmem:[%s1 + $0x78] sm:$0xff]
      %v379 = vld [vmem:[%s2] sm:$0x3]
      %v381 = vlaneseq
      %v382 = vshrl.u32 %v381, 7
      %v383 = vsub.s32 0, %v382
      %v384 = vrot.slane %v379, %v383
      %v385 = vlaneseq
      %v386 = vshrl.u32 %v385, 7
      %v387 = vsub.s32 1, %v386
      %v388 = vrot.slane %v379, %v387
      %v407 = vunpack.c.l.b16 %v363
      %v408 = vunpack.c.h.b16 %v363
      %v409 = vunpack.c.l.b16 %v364
      %v410 = vunpack.c.h.b16 %v364
      %v411 = vunpack.c.l.b16 %v365
      %v412 = vunpack.c.h.b16 %v365
      %v413 = vunpack.c.l.b16 %v366
      %v414 = vunpack.c.h.b16 %v366
      %v415 = vunpack.c.l.b16 %v367
      %v416 = vunpack.c.h.b16 %v367
      %v417 = vunpack.c.l.b16 %v368
      %v418 = vunpack.c.h.b16 %v368
      %v419 = vunpack.c.l.b16 %v369
      %v420 = vunpack.c.h.b16 %v369
      %v421 = vunpack.c.l.b16 %v370
      %v422 = vunpack.c.h.b16 %v370
      %v423 = vunpack.c.l.b16 %v371
      %v424 = vunpack.c.h.b16 %v371
      %v425 = vunpack.c.l.b16 %v372
      %v426 = vunpack.c.h.b16 %v372
      %v427 = vunpack.c.l.b16 %v373
      %v428 = vunpack.c.h.b16 %v373
      %v429 = vunpack.c.l.b16 %v374
      %v430 = vunpack.c.h.b16 %v374
      %v431 = vunpack.c.l.b16 %v375
      %v432 = vunpack.c.h.b16 %v375
      %v433 = vunpack.c.l.b16 %v376
      %v434 = vunpack.c.h.b16 %v376
      %v435 = vunpack.c.l.b16 %v377
      %v436 = vunpack.c.h.b16 %v377
      %v437 = vunpack.c.l.b16 %v378
      %v438 = vunpack.c.h.b16 %v378
      %v439 = vpack.c.b16 %v409, %v407
      %v440 = vpack.c.b16 %v410, %v408
      %v441 = vpack.c.b16 %v413, %v411
      %v442 = vpack.c.b16 %v414, %v412
      %v443 = vpack.c.b16 %v417, %v415
      %v444 = vpack.c.b16 %v418, %v416
      %v445 = vpack.c.b16 %v421, %v419
      %v446 = vpack.c.b16 %v422, %v420
      %v447 = vpack.c.b16 %v425, %v423
      %v448 = vpack.c.b16 %v426, %v424
      %v449 = vpack.c.b16 %v429, %v427
      %v450 = vpack.c.b16 %v430, %v428
      %v451 = vpack.c.b16 %v433, %v431
      %v452 = vpack.c.b16 %v434, %v432
      %v453 = vpack.c.b16 %v437, %v435
      %v454 = vpack.c.b16 %v438, %v436
      %471 = vmatprep.subr.bf16.mxu0 %v454
      %472 = vmatpush1.bf16.msra.mxu0 %v453
      %473 = vmatprep.subr.bf16.mxu0 %v452
      %474 = vmatpush1.bf16.msra.mxu0 %v451
      %475 = vmatprep.subr.bf16.mxu0 %v450
      %476 = vmatpush1.bf16.msra.mxu0 %v449
      %477 = vmatprep.subr.bf16.mxu0 %v448
      %478 = vmatpush1.bf16.msra.mxu0 %v447
      %479 = vmatprep.subr.bf16.mxu0 %v446
      %480 = vmatpush1.bf16.msra.mxu0 %v445
      %481 = vmatprep.subr.bf16.mxu0 %v444
      %482 = vmatpush1.bf16.msra.mxu0 %v443
      %483 = vmatprep.subr.bf16.mxu0 %v442
      %484 = vmatpush1.bf16.msra.mxu0 %v441
      %485 = vmatprep.subr.bf16.mxu0 %v440
      %486 = vmatpush1.bf16.msra.mxu0 %v439
      %487 = vmatprep.subr.bf16.mxu0 0
      %488 = vmatpush2.bf16.msra.mxu0 0
      %489 = vmatprep.subr.bf16.mxu0 0
      %490 = vmatpush2.bf16.msra.mxu0 0
      %491 = vmatprep.subr.bf16.mxu0 0
      %492 = vmatpush2.bf16.msra.mxu0 0
      %493 = vmatprep.subr.bf16.mxu0 0
      %494 = vmatpush2.bf16.msra.mxu0 0
      %495 = vmatprep.subr.bf16.mxu0 0
      %496 = vmatpush2.bf16.msra.mxu0 0
      %497 = vmatprep.subr.bf16.mxu0 0
      %498 = vmatpush2.bf16.msra.mxu0 0
      %499 = vmatprep.subr.bf16.mxu0 0
      %500 = vmatpush2.bf16.msra.mxu0 0
      %501 = vmatprep.subr.bf16.mxu0 0
      %502 = vmatpush2.bf16.msra.mxu0 0
      %503 = vmatprep.mubr.bf16.mxu0 0
      %504 = vmatmul.mubr.bf16.gmra.mxu0 %v355
      %v505 = vpop.f32.mrf.mxu0
      %v506 = vadd.f32 %v384, %v505
      %v507 = vpop.f32.mrf.mxu0
      %v508 = vadd.f32 %v388, %v507
      %v509 = vpop.f32.mrf.mxu0
      %v510 = vadd.f32 %v384, %v509
      %v511 = vpop.f32.mrf.mxu0
      %v512 = vadd.f32 %v388, %v511
      %513 = vmatprep.mubr.bf16.mxu0 0
      %514 = vmatmul.mubr.bf16.gmra.mxu0 %v356
      %v515 = vpop.f32.mrf.mxu0
      %v516 = vadd.f32 %v384, %v515
      %v517 = vpop.f32.mrf.mxu0
      %v518 = vadd.f32 %v388, %v517
      %v519 = vpop.f32.mrf.mxu0
      %v520 = vadd.f32 %v384, %v519
      %v521 = vpop.f32.mrf.mxu0
      %v522 = vadd.f32 %v388, %v521
      %523 = vmatprep.mubr.bf16.mxu0 0
      %524 = vmatmul.mubr.bf16.gmra.mxu0 %v357
      %v525 = vpop.f32.mrf.mxu0
      %v526 = vadd.f32 %v384, %v525
      %v527 = vpop.f32.mrf.mxu0
      %v528 = vadd.f32 %v388, %v527
      %v529 = vpop.f32.mrf.mxu0
      %v530 = vadd.f32 %v384, %v529
      %v531 = vpop.f32.mrf.mxu0
      %v532 = vadd.f32 %v388, %v531
      %533 = vmatprep.mubr.bf16.mxu0 0
      %534 = vmatmul.mubr.bf16.gmra.mxu0 %v358
      %v535 = vpop.f32.mrf.mxu0
      %v536 = vadd.f32 %v384, %v535
      %v537 = vpop.f32.mrf.mxu0
      %v538 = vadd.f32 %v388, %v537
      %v539 = vpop.f32.mrf.mxu0
      %v540 = vadd.f32 %v384, %v539
      %v541 = vpop.f32.mrf.mxu0
      %v542 = vadd.f32 %v388, %v541
      %543 = vmatprep.mubr.bf16.mxu0 0
      %544 = vmatmul.mubr.bf16.gmra.mxu0 %v359
      %v545 = vpop.f32.mrf.mxu0
      %v546 = vadd.f32 %v384, %v545
      %v547 = vpop.f32.mrf.mxu0
      %v548 = vadd.f32 %v388, %v547
      %v549 = vpop.f32.mrf.mxu0
      %v550 = vadd.f32 %v384, %v549
      %v551 = vpop.f32.mrf.mxu0
      %v552 = vadd.f32 %v388, %v551
      %553 = vmatprep.mubr.bf16.mxu0 0
      %554 = vmatmul.mubr.bf16.gmra.mxu0 %v360
      %v555 = vpop.f32.mrf.mxu0
      %v556 = vadd.f32 %v384, %v555
      %v557 = vpop.f32.mrf.mxu0
      %v558 = vadd.f32 %v388, %v557
      %v559 = vpop.f32.mrf.mxu0
      %v560 = vadd.f32 %v384, %v559
      %v561 = vpop.f32.mrf.mxu0
      %v562 = vadd.f32 %v388, %v561
      %563 = vmatprep.mubr.bf16.mxu0 0
      %564 = vmatmul.mubr.bf16.gmra.mxu0 %v361
      %v565 = vpop.f32.mrf.mxu0
      %v566 = vadd.f32 %v384, %v565
      %v567 = vpop.f32.mrf.mxu0
      %v568 = vadd.f32 %v388, %v567
      %v569 = vpop.f32.mrf.mxu0
      %v570 = vadd.f32 %v384, %v569
      %v571 = vpop.f32.mrf.mxu0
      %v572 = vadd.f32 %v388, %v571
      %573 = vmatprep.mubr.bf16.mxu0 0
      %574 = vmatmul.mubr.bf16.gmra.mxu0 %v362
      %v575 = vpop.f32.mrf.mxu0
      %v576 = vadd.f32 %v384, %v575
      %v577 = vpop.f32.mrf.mxu0
      %v578 = vadd.f32 %v388, %v577
      %v579 = vpop.f32.mrf.mxu0
      %v580 = vadd.f32 %v384, %v579
      %v581 = vpop.f32.mrf.mxu0
      %v582 = vadd.f32 %v388, %v581
      %583 = vdwg.mxu0
      %v584 = vmax.f32 %v506, 0.0
      %v585 = vmax.f32 %v508, 0.0
      %v586 = vmax.f32 %v510, 0.0
      %v587 = vmax.f32 %v512, 0.0
      %v588 = vmax.f32 %v516, 0.0
      %v589 = vmax.f32 %v518, 0.0
      %v590 = vmax.f32 %v520, 0.0
      %v591 = vmax.f32 %v522, 0.0
      %v592 = vmax.f32 %v526, 0.0
      %v593 = vmax.f32 %v528, 0.0
      %v594 = vmax.f32 %v530, 0.0
      %v595 = vmax.f32 %v532, 0.0
      %v596 = vmax.f32 %v536, 0.0
      %v597 = vmax.f32 %v538, 0.0
      %v598 = vmax.f32 %v540, 0.0
      %v599 = vmax.f32 %v542, 0.0
      %v600 = vmax.f32 %v546, 0.0
      %v601 = vmax.f32 %v548, 0.0
      %v602 = vmax.f32 %v550, 0.0
      %v603 = vmax.f32 %v552, 0.0
      %v604 = vmax.f32 %v556, 0.0
      %v605 = vmax.f32 %v558, 0.0
      %v606 = vmax.f32 %v560, 0.0
      %v607 = vmax.f32 %v562, 0.0
      %v608 = vmax.f32 %v566, 0.0
      %v609 = vmax.f32 %v568, 0.0
      %v610 = vmax.f32 %v570, 0.0
      %v611 = vmax.f32 %v572, 0.0
      %v612 = vmax.f32 %v576, 0.0
      %v613 = vmax.f32 %v578, 0.0
      %v614 = vmax.f32 %v580, 0.0
      %v615 = vmax.f32 %v582, 0.0
      %v616 = vpack.c.bf16 %v586, %v584
      %v617 = vpack.c.bf16 %v587, %v585
      %v618 = vpack.c.bf16 %v590, %v588
      %v619 = vpack.c.bf16 %v591, %v589
      %v620 = vpack.c.bf16 %v594, %v592
      %v621 = vpack.c.bf16 %v595, %v593
      %v622 = vpack.c.bf16 %v598, %v596
      %v623 = vpack.c.bf16 %v599, %v597
      %v624 = vpack.c.bf16 %v602, %v600
      %v625 = vpack.c.bf16 %v603, %v601
      %v626 = vpack.c.bf16 %v606, %v604
      %v627 = vpack.c.bf16 %v607, %v605
      %v628 = vpack.c.bf16 %v610, %v608
      %v629 = vpack.c.bf16 %v611, %v609
      %v630 = vpack.c.bf16 %v614, %v612
      %v631 = vpack.c.bf16 %v615, %v613
      %v632 = vld [vmem:[%s3] sm:$0xff]
      %v633 = vld [vmem:[%s3 + $0x8] sm:$0xff]
      %v634 = vld [vmem:[%s3 + $0x10] sm:$0xff]
      %v635 = vld [vmem:[%s3 + $0x18] sm:$0xff]
      %v636 = vld [vmem:[%s3 + $0x20] sm:$0xff]
      %v637 = vld [vmem:[%s3 + $0x28] sm:$0xff]
      %v638 = vld [vmem:[%s3 + $0x30] sm:$0xff]
      %v639 = vld [vmem:[%s3 + $0x38] sm:$0xff]
      %v640 = vld [vmem:[%s3 + $0x40] sm:$0xff]
      %v641 = vld [vmem:[%s3 + $0x48] sm:$0xff]
      %v642 = vld [vmem:[%s3 + $0x50] sm:$0xff]
      %v643 = vld [vmem:[%s3 + $0x58] sm:$0xff]
      %v644 = vld [vmem:[%s3 + $0x60] sm:$0xff]
      %v645 = vld [vmem:[%s3 + $0x68] sm:$0xff]
      %v646 = vld [vmem:[%s3 + $0x70] sm:$0xff]
      %v647 = vld [vmem:[%s3 + $0x78] sm:$0xff]
      %v648 = vld [vmem:[%s3 + $0x80] sm:$0xff]
      %v649 = vld [vmem:[%s3 + $0x88] sm:$0xff]
      %v650 = vld [vmem:[%s3 + $0x90] sm:$0xff]
      %v651 = vld [vmem:[%s3 + $0x98] sm:$0xff]
      %v652 = vld [vmem:[%s3 + $0xa0] sm:$0xff]
      %v653 = vld [vmem:[%s3 + $0xa8] sm:$0xff]
      %v654 = vld [vmem:[%s3 + $0xb0] sm:$0xff]
      %v655 = vld [vmem:[%s3 + $0xb8] sm:$0xff]
      %v656 = vld [vmem:[%s3 + $0xc0] sm:$0xff]
      %v657 = vld [vmem:[%s3 + $0xc8] sm:$0xff]
      %v658 = vld [vmem:[%s3 + $0xd0] sm:$0xff]
      %v659 = vld [vmem:[%s3 + $0xd8] sm:$0xff]
      %v660 = vld [vmem:[%s3 + $0xe0] sm:$0xff]
      %v661 = vld [vmem:[%s3 + $0xe8] sm:$0xff]
      %v662 = vld [vmem:[%s3 + $0xf0] sm:$0xff]
      %v663 = vld [vmem:[%s3 + $0xf8] sm:$0xff]
      %v664 = vld [vmem:[%s4] sm:$0x3]
      %v666 = vlaneseq
      %v667 = vshrl.u32 %v666, 7
      %v668 = vsub.s32 0, %v667
      %v669 = vrot.slane %v664, %v668
      %v670 = vlaneseq
      %v671 = vshrl.u32 %v670, 7
      %v672 = vsub.s32 1, %v671
      %v673 = vrot.slane %v664, %v672
      %v708 = vunpack.c.l.b16 %v632
      %v709 = vunpack.c.h.b16 %v632
      %v710 = vunpack.c.l.b16 %v633
      %v711 = vunpack.c.h.b16 %v633
      %v712 = vunpack.c.l.b16 %v634
      %v713 = vunpack.c.h.b16 %v634
      %v714 = vunpack.c.l.b16 %v635
      %v715 = vunpack.c.h.b16 %v635
      %v716 = vunpack.c.l.b16 %v636
      %v717 = vunpack.c.h.b16 %v636
      %v718 = vunpack.c.l.b16 %v637
      %v719 = vunpack.c.h.b16 %v637
      %v720 = vunpack.c.l.b16 %v638
      %v721 = vunpack.c.h.b16 %v638
      %v722 = vunpack.c.l.b16 %v639
      %v723 = vunpack.c.h.b16 %v639
      %v724 = vunpack.c.l.b16 %v640
      %v725 = vunpack.c.h.b16 %v640
      %v726 = vunpack.c.l.b16 %v641
      %v727 = vunpack.c.h.b16 %v641
      %v728 = vunpack.c.l.b16 %v642
      %v729 = vunpack.c.h.b16 %v642
      %v730 = vunpack.c.l.b16 %v643
      %v731 = vunpack.c.h.b16 %v643
      %v732 = vunpack.c.l.b16 %v644
      %v733 = vunpack.c.h.b16 %v644
      %v734 = vunpack.c.l.b16 %v645
      %v735 = vunpack.c.h.b16 %v645
      %v736 = vunpack.c.l.b16 %v646
      %v737 = vunpack.c.h.b16 %v646
      %v738 = vunpack.c.l.b16 %v647
      %v739 = vunpack.c.h.b16 %v647
      %v740 = vunpack.c.l.b16 %v648
      %v741 = vunpack.c.h.b16 %v648
      %v742 = vunpack.c.l.b16 %v649
      %v743 = vunpack.c.h.b16 %v649
      %v744 = vunpack.c.l.b16 %v650
      %v745 = vunpack.c.h.b16 %v650
      %v746 = vunpack.c.l.b16 %v651
      %v747 = vunpack.c.h.b16 %v651
      %v748 = vunpack.c.l.b16 %v652
      %v749 = vunpack.c.h.b16 %v652
      %v750 = vunpack.c.l.b16 %v653
      %v751 = vunpack.c.h.b16 %v653
      %v752 = vunpack.c.l.b16 %v654
      %v753 = vunpack.c.h.b16 %v654
      %v754 = vunpack.c.l.b16 %v655
      %v755 = vunpack.c.h.b16 %v655
      %v756 = vunpack.c.l.b16 %v656
      %v757 = vunpack.c.h.b16 %v656
      %v758 = vunpack.c.l.b16 %v657
      %v759 = vunpack.c.h.b16 %v657
      %v760 = vunpack.c.l.b16 %v658
      %v761 = vunpack.c.h.b16 %v658
      %v762 = vunpack.c.l.b16 %v659
      %v763 = vunpack.c.h.b16 %v659
      %v764 = vunpack.c.l.b16 %v660
      %v765 = vunpack.c.h.b16 %v660
      %v766 = vunpack.c.l.b16 %v661
      %v767 = vunpack.c.h.b16 %v661
      %v768 = vunpack.c.l.b16 %v662
      %v769 = vunpack.c.h.b16 %v662
      %v770 = vunpack.c.l.b16 %v663
      %v771 = vunpack.c.h.b16 %v663
      %v772 = vpack.c.b16 %v710, %v708
      %v773 = vpack.c.b16 %v711, %v709
      %v774 = vpack.c.b16 %v714, %v712
      %v775 = vpack.c.b16 %v715, %v713
      %v776 = vpack.c.b16 %v718, %v716
      %v777 = vpack.c.b16 %v719, %v717
      %v778 = vpack.c.b16 %v722, %v720
      %v779 = vpack.c.b16 %v723, %v721
      %v780 = vpack.c.b16 %v726, %v724
      %v781 = vpack.c.b16 %v727, %v725
      %v782 = vpack.c.b16 %v730, %v728
      %v783 = vpack.c.b16 %v731, %v729
      %v784 = vpack.c.b16 %v734, %v732
      %v785 = vpack.c.b16 %v735, %v733
      %v786 = vpack.c.b16 %v738, %v736
      %v787 = vpack.c.b16 %v739, %v737
      %v788 = vpack.c.b16 %v742, %v740
      %v789 = vpack.c.b16 %v743, %v741
      %v790 = vpack.c.b16 %v746, %v744
      %v791 = vpack.c.b16 %v747, %v745
      %v792 = vpack.c.b16 %v750, %v748
      %v793 = vpack.c.b16 %v751, %v749
      %v794 = vpack.c.b16 %v754, %v752
      %v795 = vpack.c.b16 %v755, %v753
      %v796 = vpack.c.b16 %v758, %v756
      %v797 = vpack.c.b16 %v759, %v757
      %v798 = vpack.c.b16 %v762, %v760
      %v799 = vpack.c.b16 %v763, %v761
      %v800 = vpack.c.b16 %v766, %v764
      %v801 = vpack.c.b16 %v767, %v765
      %v802 = vpack.c.b16 %v770, %v768
      %v803 = vpack.c.b16 %v771, %v769
      %836 = vmatprep.subr.bf16.mxu0 %v787
      %837 = vmatpush1.bf16.msra.mxu0 %v786
      %838 = vmatprep.subr.bf16.mxu0 %v785
      %839 = vmatpush1.bf16.msra.mxu0 %v784
      %840 = vmatprep.subr.bf16.mxu0 %v783
      %841 = vmatpush1.bf16.msra.mxu0 %v782
      %842 = vmatprep.subr.bf16.mxu0 %v781
      %843 = vmatpush1.bf16.msra.mxu0 %v780
      %844 = vmatprep.subr.bf16.mxu0 %v779
      %845 = vmatpush1.bf16.msra.mxu0 %v778
      %846 = vmatprep.subr.bf16.mxu0 %v777
      %847 = vmatpush1.bf16.msra.mxu0 %v776
      %848 = vmatprep.subr.bf16.mxu0 %v775
      %849 = vmatpush1.bf16.msra.mxu0 %v774
      %850 = vmatprep.subr.bf16.mxu0 %v773
      %851 = vmatpush1.bf16.msra.mxu0 %v772
      %852 = vmatprep.subr.bf16.mxu0 %v803
      %853 = vmatpush2.bf16.msra.mxu0 %v802
      %854 = vmatprep.subr.bf16.mxu0 %v801
      %855 = vmatpush2.bf16.msra.mxu0 %v800
      %856 = vmatprep.subr.bf16.mxu0 %v799
      %857 = vmatpush2.bf16.msra.mxu0 %v798
      %858 = vmatprep.subr.bf16.mxu0 %v797
      %859 = vmatpush2.bf16.msra.mxu0 %v796
      %860 = vmatprep.subr.bf16.mxu0 %v795
      %861 = vmatpush2.bf16.msra.mxu0 %v794
      %862 = vmatprep.subr.bf16.mxu0 %v793
      %863 = vmatpush2.bf16.msra.mxu0 %v792
      %864 = vmatprep.subr.bf16.mxu0 %v791
      %865 = vmatpush2.bf16.msra.mxu0 %v790
      %866 = vmatprep.subr.bf16.mxu0 %v789
      %867 = vmatpush2.bf16.msra.mxu0 %v788
      %868 = vmatprep.mubr.bf16.mxu0 %v617
      %869 = vmatmul.mubr.bf16.gmra.mxu0 %v616
      %v870 = vpop.f32.mrf.mxu0
      %v871 = vadd.f32 %v669, %v870
      %v872 = vpop.f32.mrf.mxu0
      %v873 = vadd.f32 %v673, %v872
      %v874 = vpop.f32.mrf.mxu0
      %v875 = vadd.f32 %v669, %v874
      %v876 = vpop.f32.mrf.mxu0
      %v877 = vadd.f32 %v673, %v876
      %878 = vmatprep.mubr.bf16.mxu0 %v619
      %879 = vmatmul.mubr.bf16.gmra.mxu0 %v618
      %v880 = vpop.f32.mrf.mxu0
      %v881 = vadd.f32 %v669, %v880
      %v882 = vpop.f32.mrf.mxu0
      %v883 = vadd.f32 %v673, %v882
      %v884 = vpop.f32.mrf.mxu0
      %v885 = vadd.f32 %v669, %v884
      %v886 = vpop.f32.mrf.mxu0
      %v887 = vadd.f32 %v673, %v886
      %888 = vmatprep.mubr.bf16.mxu0 %v621
      %889 = vmatmul.mubr.bf16.gmra.mxu0 %v620
      %v890 = vpop.f32.mrf.mxu0
      %v891 = vadd.f32 %v669, %v890
      %v892 = vpop.f32.mrf.mxu0
      %v893 = vadd.f32 %v673, %v892
      %v894 = vpop.f32.mrf.mxu0
      %v895 = vadd.f32 %v669, %v894
      %v896 = vpop.f32.mrf.mxu0
      %v897 = vadd.f32 %v673, %v896
      %898 = vmatprep.mubr.bf16.mxu0 %v623
      %899 = vmatmul.mubr.bf16.gmra.mxu0 %v622
      %v900 = vpop.f32.mrf.mxu0
      %v901 = vadd.f32 %v669, %v900
      %v902 = vpop.f32.mrf.mxu0
      %v903 = vadd.f32 %v673, %v902
      %v904 = vpop.f32.mrf.mxu0
      %v905 = vadd.f32 %v669, %v904
      %v906 = vpop.f32.mrf.mxu0
      %v907 = vadd.f32 %v673, %v906
      %908 = vmatprep.mubr.bf16.mxu0 %v625
      %909 = vmatmul.mubr.bf16.gmra.mxu0 %v624
      %v910 = vpop.f32.mrf.mxu0
      %v911 = vadd.f32 %v669, %v910
      %v912 = vpop.f32.mrf.mxu0
      %v913 = vadd.f32 %v673, %v912
      %v914 = vpop.f32.mrf.mxu0
      %v915 = vadd.f32 %v669, %v914
      %v916 = vpop.f32.mrf.mxu0
      %v917 = vadd.f32 %v673, %v916
      %918 = vmatprep.mubr.bf16.mxu0 %v627
      %919 = vmatmul.mubr.bf16.gmra.mxu0 %v626
      %v920 = vpop.f32.mrf.mxu0
      %v921 = vadd.f32 %v669, %v920
      %v922 = vpop.f32.mrf.mxu0
      %v923 = vadd.f32 %v673, %v922
      %v924 = vpop.f32.mrf.mxu0
      %v925 = vadd.f32 %v669, %v924
      %v926 = vpop.f32.mrf.mxu0
      %v927 = vadd.f32 %v673, %v926
      %928 = vmatprep.mubr.bf16.mxu0 %v629
      %929 = vmatmul.mubr.bf16.gmra.mxu0 %v628
      %v930 = vpop.f32.mrf.mxu0
      %v931 = vadd.f32 %v669, %v930
      %v932 = vpop.f32.mrf.mxu0
      %v933 = vadd.f32 %v673, %v932
      %v934 = vpop.f32.mrf.mxu0
      %v935 = vadd.f32 %v669, %v934
      %v936 = vpop.f32.mrf.mxu0
      %v937 = vadd.f32 %v673, %v936
      %938 = vmatprep.mubr.bf16.mxu0 %v631
      %939 = vmatmul.mubr.bf16.gmra.mxu0 %v630
      %v940 = vpop.f32.mrf.mxu0
      %v941 = vadd.f32 %v669, %v940
      %v942 = vpop.f32.mrf.mxu0
      %v943 = vadd.f32 %v673, %v942
      %v944 = vpop.f32.mrf.mxu0
      %v945 = vadd.f32 %v669, %v944
      %v946 = vpop.f32.mrf.mxu0
      %v947 = vadd.f32 %v673, %v946
      %948 = vdwg.mxu0
      %v949 = vmax.f32 %v871, 0.0
      %v950 = vmax.f32 %v873, 0.0
      %v951 = vmax.f32 %v875, 0.0
      %v952 = vmax.f32 %v877, 0.0
      %v953 = vmax.f32 %v881, 0.0
      %v954 = vmax.f32 %v883, 0.0
      %v955 = vmax.f32 %v885, 0.0
      %v956 = vmax.f32 %v887, 0.0
      %v957 = vmax.f32 %v891, 0.0
      %v958 = vmax.f32 %v893, 0.0
      %v959 = vmax.f32 %v895, 0.0
      %v960 = vmax.f32 %v897, 0.0
      %v961 = vmax.f32 %v901, 0.0
      %v962 = vmax.f32 %v903, 0.0
      %v963 = vmax.f32 %v905, 0.0
      %v964 = vmax.f32 %v907, 0.0
      %v965 = vmax.f32 %v911, 0.0
      %v966 = vmax.f32 %v913, 0.0
      %v967 = vmax.f32 %v915, 0.0
      %v968 = vmax.f32 %v917, 0.0
      %v969 = vmax.f32 %v921, 0.0
      %v970 = vmax.f32 %v923, 0.0
      %v971 = vmax.f32 %v925, 0.0
      %v972 = vmax.f32 %v927, 0.0
      %v973 = vmax.f32 %v931, 0.0
      %v974 = vmax.f32 %v933, 0.0
      %v975 = vmax.f32 %v935, 0.0
      %v976 = vmax.f32 %v937, 0.0
      %v977 = vmax.f32 %v941, 0.0
      %v978 = vmax.f32 %v943, 0.0
      %v979 = vmax.f32 %v945, 0.0
      %v980 = vmax.f32 %v947, 0.0
      %v981 = vpack.c.bf16 %v951, %v949
      %v982 = vpack.c.bf16 %v952, %v950
      %v983 = vpack.c.bf16 %v955, %v953
      %v984 = vpack.c.bf16 %v956, %v954
      %v985 = vpack.c.bf16 %v959, %v957
      %v986 = vpack.c.bf16 %v960, %v958
      %v987 = vpack.c.bf16 %v963, %v961
      %v988 = vpack.c.bf16 %v964, %v962
      %v989 = vpack.c.bf16 %v967, %v965
      %v990 = vpack.c.bf16 %v968, %v966
      %v991 = vpack.c.bf16 %v971, %v969
      %v992 = vpack.c.bf16 %v972, %v970
      %v993 = vpack.c.bf16 %v975, %v973
      %v994 = vpack.c.bf16 %v976, %v974
      %v995 = vpack.c.bf16 %v979, %v977
      %v996 = vpack.c.bf16 %v980, %v978
      %v997 = vld [vmem:[%s5] sm:$0xff]
      %v998 = vld [vmem:[%s5 + $0x8] sm:$0xff]
      %v999 = vld [vmem:[%s5 + $0x10] sm:$0xff]
      %v1000 = vld [vmem:[%s5 + $0x18] sm:$0xff]
      %v1001 = vld [vmem:[%s5 + $0x20] sm:$0xff]
      %v1002 = vld [vmem:[%s5 + $0x28] sm:$0xff]
      %v1003 = vld [vmem:[%s5 + $0x30] sm:$0xff]
      %v1004 = vld [vmem:[%s5 + $0x38] sm:$0xff]
      %v1005 = vld [vmem:[%s5 + $0x40] sm:$0xff]
      %v1006 = vld [vmem:[%s5 + $0x48] sm:$0xff]
      %v1007 = vld [vmem:[%s5 + $0x50] sm:$0xff]
      %v1008 = vld [vmem:[%s5 + $0x58] sm:$0xff]
      %v1009 = vld [vmem:[%s5 + $0x60] sm:$0xff]
      %v1010 = vld [vmem:[%s5 + $0x68] sm:$0xff]
      %v1011 = vld [vmem:[%s5 + $0x70] sm:$0xff]
      %v1012 = vld [vmem:[%s5 + $0x78] sm:$0xff]
      %v1013 = vld [vmem:[%s5 + $0x80] sm:$0xff]
      %v1014 = vld [vmem:[%s5 + $0x88] sm:$0xff]
      %v1015 = vld [vmem:[%s5 + $0x90] sm:$0xff]
      %v1016 = vld [vmem:[%s5 + $0x98] sm:$0xff]
      %v1017 = vld [vmem:[%s5 + $0xa0] sm:$0xff]
      %v1018 = vld [vmem:[%s5 + $0xa8] sm:$0xff]
      %v1019 = vld [vmem:[%s5 + $0xb0] sm:$0xff]
      %v1020 = vld [vmem:[%s5 + $0xb8] sm:$0xff]
      %v1021 = vld [vmem:[%s5 + $0xc0] sm:$0xff]
      %v1022 = vld [vmem:[%s5 + $0xc8] sm:$0xff]
      %v1023 = vld [vmem:[%s5 + $0xd0] sm:$0xff]
      %v1024 = vld [vmem:[%s5 + $0xd8] sm:$0xff]
      %v1025 = vld [vmem:[%s5 + $0xe0] sm:$0xff]
      %v1026 = vld [vmem:[%s5 + $0xe8] sm:$0xff]
      %v1027 = vld [vmem:[%s5 + $0xf0] sm:$0xff]
      %v1028 = vld [vmem:[%s5 + $0xf8] sm:$0xff]
      %v1029 = vld [vmem:[%s6] sm:$0x3]
      %v1031 = vlaneseq
      %v1032 = vshrl.u32 %v1031, 7
      %v1033 = vsub.s32 0, %v1032
      %v1034 = vrot.slane %v1029, %v1033
      %v1035 = vlaneseq
      %v1036 = vshrl.u32 %v1035, 7
      %v1037 = vsub.s32 1, %v1036
      %v1038 = vrot.slane %v1029, %v1037
      %v1073 = vunpack.c.l.b16 %v997
      %v1074 = vunpack.c.h.b16 %v997
      %v1075 = vunpack.c.l.b16 %v998
      %v1076 = vunpack.c.h.b16 %v998
      %v1077 = vunpack.c.l.b16 %v999
      %v1078 = vunpack.c.h.b16 %v999
      %v1079 = vunpack.c.l.b16 %v1000
      %v1080 = vunpack.c.h.b16 %v1000
      %v1081 = vunpack.c.l.b16 %v1001
      %v1082 = vunpack.c.h.b16 %v1001
      %v1083 = vunpack.c.l.b16 %v1002
      %v1084 = vunpack.c.h.b16 %v1002
      %v1085 = vunpack.c.l.b16 %v1003
      %v1086 = vunpack.c.h.b16 %v1003
      %v1087 = vunpack.c.l.b16 %v1004
      %v1088 = vunpack.c.h.b16 %v1004
      %v1089 = vunpack.c.l.b16 %v1005
      %v1090 = vunpack.c.h.b16 %v1005
      %v1091 = vunpack.c.l.b16 %v1006
      %v1092 = vunpack.c.h.b16 %v1006
      %v1093 = vunpack.c.l.b16 %v1007
      %v1094 = vunpack.c.h.b16 %v1007
      %v1095 = vunpack.c.l.b16 %v1008
      %v1096 = vunpack.c.h.b16 %v1008
      %v1097 = vunpack.c.l.b16 %v1009
      %v1098 = vunpack.c.h.b16 %v1009
      %v1099 = vunpack.c.l.b16 %v1010
      %v1100 = vunpack.c.h.b16 %v1010
      %v1101 = vunpack.c.l.b16 %v1011
      %v1102 = vunpack.c.h.b16 %v1011
      %v1103 = vunpack.c.l.b16 %v1012
      %v1104 = vunpack.c.h.b16 %v1012
      %v1105 = vunpack.c.l.b16 %v1013
      %v1106 = vunpack.c.h.b16 %v1013
      %v1107 = vunpack.c.l.b16 %v1014
      %v1108 = vunpack.c.h.b16 %v1014
      %v1109 = vunpack.c.l.b16 %v1015
      %v1110 = vunpack.c.h.b16 %v1015
      %v1111 = vunpack.c.l.b16 %v1016
      %v1112 = vunpack.c.h.b16 %v1016
      %v1113 = vunpack.c.l.b16 %v1017
      %v1114 = vunpack.c.h.b16 %v1017
      %v1115 = vunpack.c.l.b16 %v1018
      %v1116 = vunpack.c.h.b16 %v1018
      %v1117 = vunpack.c.l.b16 %v1019
      %v1118 = vunpack.c.h.b16 %v1019
      %v1119 = vunpack.c.l.b16 %v1020
      %v1120 = vunpack.c.h.b16 %v1020
      %v1121 = vunpack.c.l.b16 %v1021
      %v1122 = vunpack.c.h.b16 %v1021
      %v1123 = vunpack.c.l.b16 %v1022
      %v1124 = vunpack.c.h.b16 %v1022
      %v1125 = vunpack.c.l.b16 %v1023
      %v1126 = vunpack.c.h.b16 %v1023
      %v1127 = vunpack.c.l.b16 %v1024
      %v1128 = vunpack.c.h.b16 %v1024
      %v1129 = vunpack.c.l.b16 %v1025
      %v1130 = vunpack.c.h.b16 %v1025
      %v1131 = vunpack.c.l.b16 %v1026
      %v1132 = vunpack.c.h.b16 %v1026
      %v1133 = vunpack.c.l.b16 %v1027
      %v1134 = vunpack.c.h.b16 %v1027
      %v1135 = vunpack.c.l.b16 %v1028
      %v1136 = vunpack.c.h.b16 %v1028
      %v1137 = vpack.c.b16 %v1075, %v1073
      %v1138 = vpack.c.b16 %v1076, %v1074
      %v1139 = vpack.c.b16 %v1079, %v1077
      %v1140 = vpack.c.b16 %v1080, %v1078
      %v1141 = vpack.c.b16 %v1083, %v1081
      %v1142 = vpack.c.b16 %v1084, %v1082
      %v1143 = vpack.c.b16 %v1087, %v1085
      %v1144 = vpack.c.b16 %v1088, %v1086
      %v1145 = vpack.c.b16 %v1091, %v1089
      %v1146 = vpack.c.b16 %v1092, %v1090
      %v1147 = vpack.c.b16 %v1095, %v1093
      %v1148 = vpack.c.b16 %v1096, %v1094
      %v1149 = vpack.c.b16 %v1099, %v1097
      %v1150 = vpack.c.b16 %v1100, %v1098
      %v1151 = vpack.c.b16 %v1103, %v1101
      %v1152 = vpack.c.b16 %v1104, %v1102
      %v1153 = vpack.c.b16 %v1107, %v1105
      %v1154 = vpack.c.b16 %v1108, %v1106
      %v1155 = vpack.c.b16 %v1111, %v1109
      %v1156 = vpack.c.b16 %v1112, %v1110
      %v1157 = vpack.c.b16 %v1115, %v1113
      %v1158 = vpack.c.b16 %v1116, %v1114
      %v1159 = vpack.c.b16 %v1119, %v1117
      %v1160 = vpack.c.b16 %v1120, %v1118
      %v1161 = vpack.c.b16 %v1123, %v1121
      %v1162 = vpack.c.b16 %v1124, %v1122
      %v1163 = vpack.c.b16 %v1127, %v1125
      %v1164 = vpack.c.b16 %v1128, %v1126
      %v1165 = vpack.c.b16 %v1131, %v1129
      %v1166 = vpack.c.b16 %v1132, %v1130
      %v1167 = vpack.c.b16 %v1135, %v1133
      %v1168 = vpack.c.b16 %v1136, %v1134
      %1201 = vmatprep.subr.bf16.mxu0 %v1152
      %1202 = vmatpush1.bf16.msra.mxu0 %v1151
      %1203 = vmatprep.subr.bf16.mxu0 %v1150
      %1204 = vmatpush1.bf16.msra.mxu0 %v1149
      %1205 = vmatprep.subr.bf16.mxu0 %v1148
      %1206 = vmatpush1.bf16.msra.mxu0 %v1147
      %1207 = vmatprep.subr.bf16.mxu0 %v1146
      %1208 = vmatpush1.bf16.msra.mxu0 %v1145
      %1209 = vmatprep.subr.bf16.mxu0 %v1144
      %1210 = vmatpush1.bf16.msra.mxu0 %v1143
      %1211 = vmatprep.subr.bf16.mxu0 %v1142
      %1212 = vmatpush1.bf16.msra.mxu0 %v1141
      %1213 = vmatprep.subr.bf16.mxu0 %v1140
      %1214 = vmatpush1.bf16.msra.mxu0 %v1139
      %1215 = vmatprep.subr.bf16.mxu0 %v1138
      %1216 = vmatpush1.bf16.msra.mxu0 %v1137
      %1217 = vmatprep.subr.bf16.mxu0 %v1168
      %1218 = vmatpush2.bf16.msra.mxu0 %v1167
      %1219 = vmatprep.subr.bf16.mxu0 %v1166
      %1220 = vmatpush2.bf16.msra.mxu0 %v1165
      %1221 = vmatprep.subr.bf16.mxu0 %v1164
      %1222 = vmatpush2.bf16.msra.mxu0 %v1163
      %1223 = vmatprep.subr.bf16.mxu0 %v1162
      %1224 = vmatpush2.bf16.msra.mxu0 %v1161
      %1225 = vmatprep.subr.bf16.mxu0 %v1160
      %1226 = vmatpush2.bf16.msra.mxu0 %v1159
      %1227 = vmatprep.subr.bf16.mxu0 %v1158
      %1228 = vmatpush2.bf16.msra.mxu0 %v1157
      %1229 = vmatprep.subr.bf16.mxu0 %v1156
      %1230 = vmatpush2.bf16.msra.mxu0 %v1155
      %1231 = vmatprep.subr.bf16.mxu0 %v1154
      %1232 = vmatpush2.bf16.msra.mxu0 %v1153
      %1233 = vmatprep.mubr.bf16.mxu0 %v982
      %1234 = vmatmul.mubr.bf16.gmra.mxu0 %v981
      %v1235 = vpop.f32.mrf.mxu0
      %v1236 = vadd.f32 %v1034, %v1235
      %v1237 = vpop.f32.mrf.mxu0
      %v1238 = vadd.f32 %v1038, %v1237
      %v1239 = vpop.f32.mrf.mxu0
      %v1240 = vadd.f32 %v1034, %v1239
      %v1241 = vpop.f32.mrf.mxu0
      %v1242 = vadd.f32 %v1038, %v1241
      %1243 = vmatprep.mubr.bf16.mxu0 %v984
      %1244 = vmatmul.mubr.bf16.gmra.mxu0 %v983
      %v1245 = vpop.f32.mrf.mxu0
      %v1246 = vadd.f32 %v1034, %v1245
      %v1247 = vpop.f32.mrf.mxu0
      %v1248 = vadd.f32 %v1038, %v1247
      %v1249 = vpop.f32.mrf.mxu0
      %v1250 = vadd.f32 %v1034, %v1249
      %v1251 = vpop.f32.mrf.mxu0
      %v1252 = vadd.f32 %v1038, %v1251
      %1253 = vmatprep.mubr.bf16.mxu0 %v986
      %1254 = vmatmul.mubr.bf16.gmra.mxu0 %v985
      %v1255 = vpop.f32.mrf.mxu0
      %v1256 = vadd.f32 %v1034, %v1255
      %v1257 = vpop.f32.mrf.mxu0
      %v1258 = vadd.f32 %v1038, %v1257
      %v1259 = vpop.f32.mrf.mxu0
      %v1260 = vadd.f32 %v1034, %v1259
      %v1261 = vpop.f32.mrf.mxu0
      %v1262 = vadd.f32 %v1038, %v1261
      %1263 = vmatprep.mubr.bf16.mxu0 %v988
      %1264 = vmatmul.mubr.bf16.gmra.mxu0 %v987
      %v1265 = vpop.f32.mrf.mxu0
      %v1266 = vadd.f32 %v1034, %v1265
      %v1267 = vpop.f32.mrf.mxu0
      %v1268 = vadd.f32 %v1038, %v1267
      %v1269 = vpop.f32.mrf.mxu0
      %v1270 = vadd.f32 %v1034, %v1269
      %v1271 = vpop.f32.mrf.mxu0
      %v1272 = vadd.f32 %v1038, %v1271
      %1273 = vmatprep.mubr.bf16.mxu0 %v990
      %1274 = vmatmul.mubr.bf16.gmra.mxu0 %v989
      %v1275 = vpop.f32.mrf.mxu0
      %v1276 = vadd.f32 %v1034, %v1275
      %v1277 = vpop.f32.mrf.mxu0
      %v1278 = vadd.f32 %v1038, %v1277
      %v1279 = vpop.f32.mrf.mxu0
      %v1280 = vadd.f32 %v1034, %v1279
      %v1281 = vpop.f32.mrf.mxu0
      %v1282 = vadd.f32 %v1038, %v1281
      %1283 = vmatprep.mubr.bf16.mxu0 %v992
      %1284 = vmatmul.mubr.bf16.gmra.mxu0 %v991
      %v1285 = vpop.f32.mrf.mxu0
      %v1286 = vadd.f32 %v1034, %v1285
      %v1287 = vpop.f32.mrf.mxu0
      %v1288 = vadd.f32 %v1038, %v1287
      %v1289 = vpop.f32.mrf.mxu0
      %v1290 = vadd.f32 %v1034, %v1289
      %v1291 = vpop.f32.mrf.mxu0
      %v1292 = vadd.f32 %v1038, %v1291
      %1293 = vmatprep.mubr.bf16.mxu0 %v994
      %1294 = vmatmul.mubr.bf16.gmra.mxu0 %v993
      %v1295 = vpop.f32.mrf.mxu0
      %v1296 = vadd.f32 %v1034, %v1295
      %v1297 = vpop.f32.mrf.mxu0
      %v1298 = vadd.f32 %v1038, %v1297
      %v1299 = vpop.f32.mrf.mxu0
      %v1300 = vadd.f32 %v1034, %v1299
      %v1301 = vpop.f32.mrf.mxu0
      %v1302 = vadd.f32 %v1038, %v1301
      %1303 = vmatprep.mubr.bf16.mxu0 %v996
      %1304 = vmatmul.mubr.bf16.gmra.mxu0 %v995
      %v1305 = vpop.f32.mrf.mxu0
      %v1306 = vadd.f32 %v1034, %v1305
      %v1307 = vpop.f32.mrf.mxu0
      %v1308 = vadd.f32 %v1038, %v1307
      %v1309 = vpop.f32.mrf.mxu0
      %v1310 = vadd.f32 %v1034, %v1309
      %v1311 = vpop.f32.mrf.mxu0
      %v1312 = vadd.f32 %v1038, %v1311
      %1313 = vdwg.mxu0
      %v1314 = vmax.f32 %v1236, 0.0
      %v1315 = vmax.f32 %v1238, 0.0
      %v1316 = vmax.f32 %v1240, 0.0
      %v1317 = vmax.f32 %v1242, 0.0
      %v1318 = vmax.f32 %v1246, 0.0
      %v1319 = vmax.f32 %v1248, 0.0
      %v1320 = vmax.f32 %v1250, 0.0
      %v1321 = vmax.f32 %v1252, 0.0
      %v1322 = vmax.f32 %v1256, 0.0
      %v1323 = vmax.f32 %v1258, 0.0
      %v1324 = vmax.f32 %v1260, 0.0
      %v1325 = vmax.f32 %v1262, 0.0
      %v1326 = vmax.f32 %v1266, 0.0
      %v1327 = vmax.f32 %v1268, 0.0
      %v1328 = vmax.f32 %v1270, 0.0
      %v1329 = vmax.f32 %v1272, 0.0
      %v1330 = vmax.f32 %v1276, 0.0
      %v1331 = vmax.f32 %v1278, 0.0
      %v1332 = vmax.f32 %v1280, 0.0
      %v1333 = vmax.f32 %v1282, 0.0
      %v1334 = vmax.f32 %v1286, 0.0
      %v1335 = vmax.f32 %v1288, 0.0
      %v1336 = vmax.f32 %v1290, 0.0
      %v1337 = vmax.f32 %v1292, 0.0
      %v1338 = vmax.f32 %v1296, 0.0
      %v1339 = vmax.f32 %v1298, 0.0
      %v1340 = vmax.f32 %v1300, 0.0
      %v1341 = vmax.f32 %v1302, 0.0
      %v1342 = vmax.f32 %v1306, 0.0
      %v1343 = vmax.f32 %v1308, 0.0
      %v1344 = vmax.f32 %v1310, 0.0
      %v1345 = vmax.f32 %v1312, 0.0
      %v1346 = vpack.c.bf16 %v1316, %v1314
      %v1347 = vpack.c.bf16 %v1317, %v1315
      %v1348 = vpack.c.bf16 %v1320, %v1318
      %v1349 = vpack.c.bf16 %v1321, %v1319
      %v1350 = vpack.c.bf16 %v1324, %v1322
      %v1351 = vpack.c.bf16 %v1325, %v1323
      %v1352 = vpack.c.bf16 %v1328, %v1326
      %v1353 = vpack.c.bf16 %v1329, %v1327
      %v1354 = vpack.c.bf16 %v1332, %v1330
      %v1355 = vpack.c.bf16 %v1333, %v1331
      %v1356 = vpack.c.bf16 %v1336, %v1334
      %v1357 = vpack.c.bf16 %v1337, %v1335
      %v1358 = vpack.c.bf16 %v1340, %v1338
      %v1359 = vpack.c.bf16 %v1341, %v1339
      %v1360 = vpack.c.bf16 %v1344, %v1342
      %v1361 = vpack.c.bf16 %v1345, %v1343
      %v1362 = vld [vmem:[%s7] sm:$0xff]
      %v1363 = vld [vmem:[%s7 + $0x8] sm:$0xff]
      %v1364 = vld [vmem:[%s7 + $0x10] sm:$0xff]
      %v1365 = vld [vmem:[%s7 + $0x18] sm:$0xff]
      %v1366 = vld [vmem:[%s7 + $0x20] sm:$0xff]
      %v1367 = vld [vmem:[%s7 + $0x28] sm:$0xff]
      %v1368 = vld [vmem:[%s7 + $0x30] sm:$0xff]
      %v1369 = vld [vmem:[%s7 + $0x38] sm:$0xff]
      %v1370 = vld [vmem:[%s7 + $0x40] sm:$0xff]
      %v1371 = vld [vmem:[%s7 + $0x48] sm:$0xff]
      %v1372 = vld [vmem:[%s7 + $0x50] sm:$0xff]
      %v1373 = vld [vmem:[%s7 + $0x58] sm:$0xff]
      %v1374 = vld [vmem:[%s7 + $0x60] sm:$0xff]
      %v1375 = vld [vmem:[%s7 + $0x68] sm:$0xff]
      %v1376 = vld [vmem:[%s7 + $0x70] sm:$0xff]
      %v1377 = vld [vmem:[%s7 + $0x78] sm:$0xff]
      %v1378 = vld [vmem:[%s7 + $0x80] sm:$0xff]
      %v1379 = vld [vmem:[%s7 + $0x88] sm:$0xff]
      %v1380 = vld [vmem:[%s7 + $0x90] sm:$0xff]
      %v1381 = vld [vmem:[%s7 + $0x98] sm:$0xff]
      %v1382 = vld [vmem:[%s7 + $0xa0] sm:$0xff]
      %v1383 = vld [vmem:[%s7 + $0xa8] sm:$0xff]
      %v1384 = vld [vmem:[%s7 + $0xb0] sm:$0xff]
      %v1385 = vld [vmem:[%s7 + $0xb8] sm:$0xff]
      %v1386 = vld [vmem:[%s7 + $0xc0] sm:$0xff]
      %v1387 = vld [vmem:[%s7 + $0xc8] sm:$0xff]
      %v1388 = vld [vmem:[%s7 + $0xd0] sm:$0xff]
      %v1389 = vld [vmem:[%s7 + $0xd8] sm:$0xff]
      %v1390 = vld [vmem:[%s7 + $0xe0] sm:$0xff]
      %v1391 = vld [vmem:[%s7 + $0xe8] sm:$0xff]
      %v1392 = vld [vmem:[%s7 + $0xf0] sm:$0xff]
      %v1393 = vld [vmem:[%s7 + $0xf8] sm:$0xff]
      %v1394 = vld [vmem:[%s8] sm:$0x3]
      %v1396 = vlaneseq
      %v1397 = vshrl.u32 %v1396, 7
      %v1398 = vsub.s32 0, %v1397
      %v1399 = vrot.slane %v1394, %v1398
      %v1400 = vlaneseq
      %v1401 = vshrl.u32 %v1400, 7
      %v1402 = vsub.s32 1, %v1401
      %v1403 = vrot.slane %v1394, %v1402
      %v1438 = vunpack.c.l.b16 %v1362
      %v1439 = vunpack.c.h.b16 %v1362
      %v1440 = vunpack.c.l.b16 %v1363
      %v1441 = vunpack.c.h.b16 %v1363
      %v1442 = vunpack.c.l.b16 %v1364
      %v1443 = vunpack.c.h.b16 %v1364
      %v1444 = vunpack.c.l.b16 %v1365
      %v1445 = vunpack.c.h.b16 %v1365
      %v1446 = vunpack.c.l.b16 %v1366
      %v1447 = vunpack.c.h.b16 %v1366
      %v1448 = vunpack.c.l.b16 %v1367
      %v1449 = vunpack.c.h.b16 %v1367
      %v1450 = vunpack.c.l.b16 %v1368
      %v1451 = vunpack.c.h.b16 %v1368
      %v1452 = vunpack.c.l.b16 %v1369
      %v1453 = vunpack.c.h.b16 %v1369
      %v1454 = vunpack.c.l.b16 %v1370
      %v1455 = vunpack.c.h.b16 %v1370
      %v1456 = vunpack.c.l.b16 %v1371
      %v1457 = vunpack.c.h.b16 %v1371
      %v1458 = vunpack.c.l.b16 %v1372
      %v1459 = vunpack.c.h.b16 %v1372
      %v1460 = vunpack.c.l.b16 %v1373
      %v1461 = vunpack.c.h.b16 %v1373
      %v1462 = vunpack.c.l.b16 %v1374
      %v1463 = vunpack.c.h.b16 %v1374
      %v1464 = vunpack.c.l.b16 %v1375
      %v1465 = vunpack.c.h.b16 %v1375
      %v1466 = vunpack.c.l.b16 %v1376
      %v1467 = vunpack.c.h.b16 %v1376
      %v1468 = vunpack.c.l.b16 %v1377
      %v1469 = vunpack.c.h.b16 %v1377
      %v1470 = vunpack.c.l.b16 %v1378
      %v1471 = vunpack.c.h.b16 %v1378
      %v1472 = vunpack.c.l.b16 %v1379
      %v1473 = vunpack.c.h.b16 %v1379
      %v1474 = vunpack.c.l.b16 %v1380
      %v1475 = vunpack.c.h.b16 %v1380
      %v1476 = vunpack.c.l.b16 %v1381
      %v1477 = vunpack.c.h.b16 %v1381
      %v1478 = vunpack.c.l.b16 %v1382
      %v1479 = vunpack.c.h.b16 %v1382
      %v1480 = vunpack.c.l.b16 %v1383
      %v1481 = vunpack.c.h.b16 %v1383
      %v1482 = vunpack.c.l.b16 %v1384
      %v1483 = vunpack.c.h.b16 %v1384
      %v1484 = vunpack.c.l.b16 %v1385
      %v1485 = vunpack.c.h.b16 %v1385
      %v1486 = vunpack.c.l.b16 %v1386
      %v1487 = vunpack.c.h.b16 %v1386
      %v1488 = vunpack.c.l.b16 %v1387
      %v1489 = vunpack.c.h.b16 %v1387
      %v1490 = vunpack.c.l.b16 %v1388
      %v1491 = vunpack.c.h.b16 %v1388
      %v1492 = vunpack.c.l.b16 %v1389
      %v1493 = vunpack.c.h.b16 %v1389
      %v1494 = vunpack.c.l.b16 %v1390
      %v1495 = vunpack.c.h.b16 %v1390
      %v1496 = vunpack.c.l.b16 %v1391
      %v1497 = vunpack.c.h.b16 %v1391
      %v1498 = vunpack.c.l.b16 %v1392
      %v1499 = vunpack.c.h.b16 %v1392
      %v1500 = vunpack.c.l.b16 %v1393
      %v1501 = vunpack.c.h.b16 %v1393
      %v1502 = vpack.c.b16 %v1440, %v1438
      %v1503 = vpack.c.b16 %v1441, %v1439
      %v1504 = vpack.c.b16 %v1444, %v1442
      %v1505 = vpack.c.b16 %v1445, %v1443
      %v1506 = vpack.c.b16 %v1448, %v1446
      %v1507 = vpack.c.b16 %v1449, %v1447
      %v1508 = vpack.c.b16 %v1452, %v1450
      %v1509 = vpack.c.b16 %v1453, %v1451
      %v1510 = vpack.c.b16 %v1456, %v1454
      %v1511 = vpack.c.b16 %v1457, %v1455
      %v1512 = vpack.c.b16 %v1460, %v1458
      %v1513 = vpack.c.b16 %v1461, %v1459
      %v1514 = vpack.c.b16 %v1464, %v1462
      %v1515 = vpack.c.b16 %v1465, %v1463
      %v1516 = vpack.c.b16 %v1468, %v1466
      %v1517 = vpack.c.b16 %v1469, %v1467
      %v1518 = vpack.c.b16 %v1472, %v1470
      %v1519 = vpack.c.b16 %v1473, %v1471
      %v1520 = vpack.c.b16 %v1476, %v1474
      %v1521 = vpack.c.b16 %v1477, %v1475
      %v1522 = vpack.c.b16 %v1480, %v1478
      %v1523 = vpack.c.b16 %v1481, %v1479
      %v1524 = vpack.c.b16 %v1484, %v1482
      %v1525 = vpack.c.b16 %v1485, %v1483
      %v1526 = vpack.c.b16 %v1488, %v1486
      %v1527 = vpack.c.b16 %v1489, %v1487
      %v1528 = vpack.c.b16 %v1492, %v1490
      %v1529 = vpack.c.b16 %v1493, %v1491
      %v1530 = vpack.c.b16 %v1496, %v1494
      %v1531 = vpack.c.b16 %v1497, %v1495
      %v1532 = vpack.c.b16 %v1500, %v1498
      %v1533 = vpack.c.b16 %v1501, %v1499
      %1566 = vmatprep.subr.bf16.mxu0 %v1517
      %1567 = vmatpush1.bf16.msra.mxu0 %v1516
      %1568 = vmatprep.subr.bf16.mxu0 %v1515
      %1569 = vmatpush1.bf16.msra.mxu0 %v1514
      %1570 = vmatprep.subr.bf16.mxu0 %v1513
      %1571 = vmatpush1.bf16.msra.mxu0 %v1512
      %1572 = vmatprep.subr.bf16.mxu0 %v1511
      %1573 = vmatpush1.bf16.msra.mxu0 %v1510
      %1574 = vmatprep.subr.bf16.mxu0 %v1509
      %1575 = vmatpush1.bf16.msra.mxu0 %v1508
      %1576 = vmatprep.subr.bf16.mxu0 %v1507
      %1577 = vmatpush1.bf16.msra.mxu0 %v1506
      %1578 = vmatprep.subr.bf16.mxu0 %v1505
      %1579 = vmatpush1.bf16.msra.mxu0 %v1504
      %1580 = vmatprep.subr.bf16.mxu0 %v1503
      %1581 = vmatpush1.bf16.msra.mxu0 %v1502
      %1582 = vmatprep.subr.bf16.mxu0 %v1533
      %1583 = vmatpush2.bf16.msra.mxu0 %v1532
      %1584 = vmatprep.subr.bf16.mxu0 %v1531
      %1585 = vmatpush2.bf16.msra.mxu0 %v1530
      %1586 = vmatprep.subr.bf16.mxu0 %v1529
      %1587 = vmatpush2.bf16.msra.mxu0 %v1528
      %1588 = vmatprep.subr.bf16.mxu0 %v1527
      %1589 = vmatpush2.bf16.msra.mxu0 %v1526
      %1590 = vmatprep.subr.bf16.mxu0 %v1525
      %1591 = vmatpush2.bf16.msra.mxu0 %v1524
      %1592 = vmatprep.subr.bf16.mxu0 %v1523
      %1593 = vmatpush2.bf16.msra.mxu0 %v1522
      %1594 = vmatprep.subr.bf16.mxu0 %v1521
      %1595 = vmatpush2.bf16.msra.mxu0 %v1520
      %1596 = vmatprep.subr.bf16.mxu0 %v1519
      %1597 = vmatpush2.bf16.msra.mxu0 %v1518
      %1598 = vmatprep.mubr.bf16.mxu0 %v1347
      %1599 = vmatmul.mubr.bf16.gmra.mxu0 %v1346
      %v1600 = vpop.f32.mrf.mxu0
      %v1601 = vadd.f32 %v1399, %v1600
      %v1602 = vpop.f32.mrf.mxu0
      %v1603 = vadd.f32 %v1403, %v1602
      %v1604 = vpop.f32.mrf.mxu0
      %v1605 = vadd.f32 %v1399, %v1604
      %v1606 = vpop.f32.mrf.mxu0
      %v1607 = vadd.f32 %v1403, %v1606
      %1608 = vmatprep.mubr.bf16.mxu0 %v1349
      %1609 = vmatmul.mubr.bf16.gmra.mxu0 %v1348
      %v1610 = vpop.f32.mrf.mxu0
      %v1611 = vadd.f32 %v1399, %v1610
      %v1612 = vpop.f32.mrf.mxu0
      %v1613 = vadd.f32 %v1403, %v1612
      %v1614 = vpop.f32.mrf.mxu0
      %v1615 = vadd.f32 %v1399, %v1614
      %v1616 = vpop.f32.mrf.mxu0
      %v1617 = vadd.f32 %v1403, %v1616
      %1618 = vmatprep.mubr.bf16.mxu0 %v1351
      %1619 = vmatmul.mubr.bf16.gmra.mxu0 %v1350
      %v1620 = vpop.f32.mrf.mxu0
      %v1621 = vadd.f32 %v1399, %v1620
      %v1622 = vpop.f32.mrf.mxu0
      %v1623 = vadd.f32 %v1403, %v1622
      %v1624 = vpop.f32.mrf.mxu0
      %v1625 = vadd.f32 %v1399, %v1624
      %v1626 = vpop.f32.mrf.mxu0
      %v1627 = vadd.f32 %v1403, %v1626
      %1628 = vmatprep.mubr.bf16.mxu0 %v1353
      %1629 = vmatmul.mubr.bf16.gmra.mxu0 %v1352
      %v1630 = vpop.f32.mrf.mxu0
      %v1631 = vadd.f32 %v1399, %v1630
      %v1632 = vpop.f32.mrf.mxu0
      %v1633 = vadd.f32 %v1403, %v1632
      %v1634 = vpop.f32.mrf.mxu0
      %v1635 = vadd.f32 %v1399, %v1634
      %v1636 = vpop.f32.mrf.mxu0
      %v1637 = vadd.f32 %v1403, %v1636
      %1638 = vmatprep.mubr.bf16.mxu0 %v1355
      %1639 = vmatmul.mubr.bf16.gmra.mxu0 %v1354
      %v1640 = vpop.f32.mrf.mxu0
      %v1641 = vadd.f32 %v1399, %v1640
      %v1642 = vpop.f32.mrf.mxu0
      %v1643 = vadd.f32 %v1403, %v1642
      %v1644 = vpop.f32.mrf.mxu0
      %v1645 = vadd.f32 %v1399, %v1644
      %v1646 = vpop.f32.mrf.mxu0
      %v1647 = vadd.f32 %v1403, %v1646
      %1648 = vmatprep.mubr.bf16.mxu0 %v1357
      %1649 = vmatmul.mubr.bf16.gmra.mxu0 %v1356
      %v1650 = vpop.f32.mrf.mxu0
      %v1651 = vadd.f32 %v1399, %v1650
      %v1652 = vpop.f32.mrf.mxu0
      %v1653 = vadd.f32 %v1403, %v1652
      %v1654 = vpop.f32.mrf.mxu0
      %v1655 = vadd.f32 %v1399, %v1654
      %v1656 = vpop.f32.mrf.mxu0
      %v1657 = vadd.f32 %v1403, %v1656
      %1658 = vmatprep.mubr.bf16.mxu0 %v1359
      %1659 = vmatmul.mubr.bf16.gmra.mxu0 %v1358
      %v1660 = vpop.f32.mrf.mxu0
      %v1661 = vadd.f32 %v1399, %v1660
      %v1662 = vpop.f32.mrf.mxu0
      %v1663 = vadd.f32 %v1403, %v1662
      %v1664 = vpop.f32.mrf.mxu0
      %v1665 = vadd.f32 %v1399, %v1664
      %v1666 = vpop.f32.mrf.mxu0
      %v1667 = vadd.f32 %v1403, %v1666
      %1668 = vmatprep.mubr.bf16.mxu0 %v1361
      %1669 = vmatmul.mubr.bf16.gmra.mxu0 %v1360
      %v1670 = vpop.f32.mrf.mxu0
      %v1671 = vadd.f32 %v1399, %v1670
      %v1672 = vpop.f32.mrf.mxu0
      %v1673 = vadd.f32 %v1403, %v1672
      %v1674 = vpop.f32.mrf.mxu0
      %v1675 = vadd.f32 %v1399, %v1674
      %v1676 = vpop.f32.mrf.mxu0
      %v1677 = vadd.f32 %v1403, %v1676
      %1678 = vdwg.mxu0
      %s1679 = smul.u32 0, 2
      %s1680 = smul.addr %s1679, 8
      %s1681 = scalar_lea.vmem %s336, %s1680
      %1682 = vst [vmem:[%s1681] sm:$0xff] %v1601
      %1683 = vst [vmem:[%s1681 + $0x8] sm:$0xff] %v1603
      %1684 = vst [vmem:[%s1681 + $0x10] sm:$0xff] %v1605
      %1685 = vst [vmem:[%s1681 + $0x18] sm:$0xff] %v1607
      %1686 = vst [vmem:[%s1681 + $0x20] sm:$0xff] %v1611
      %1687 = vst [vmem:[%s1681 + $0x28] sm:$0xff] %v1613
      %1688 = vst [vmem:[%s1681 + $0x30] sm:$0xff] %v1615
      %1689 = vst [vmem:[%s1681 + $0x38] sm:$0xff] %v1617
      %1690 = vst [vmem:[%s1681 + $0x40] sm:$0xff] %v1621
      %1691 = vst [vmem:[%s1681 + $0x48] sm:$0xff] %v1623
      %1692 = vst [vmem:[%s1681 + $0x50] sm:$0xff] %v1625
      %1693 = vst [vmem:[%s1681 + $0x58] sm:$0xff] %v1627
      %1694 = vst [vmem:[%s1681 + $0x60] sm:$0xff] %v1631
      %1695 = vst [vmem:[%s1681 + $0x68] sm:$0xff] %v1633
      %1696 = vst [vmem:[%s1681 + $0x70] sm:$0xff] %v1635
      %1697 = vst [vmem:[%s1681 + $0x78] sm:$0xff] %v1637
      %1698 = vst [vmem:[%s1681 + $0x80] sm:$0xff] %v1641
      %1699 = vst [vmem:[%s1681 + $0x88] sm:$0xff] %v1643
      %1700 = vst [vmem:[%s1681 + $0x90] sm:$0xff] %v1645
      %1701 = vst [vmem:[%s1681 + $0x98] sm:$0xff] %v1647
      %1702 = vst [vmem:[%s1681 + $0xa0] sm:$0xff] %v1651
      %1703 = vst [vmem:[%s1681 + $0xa8] sm:$0xff] %v1653
      %1704 = vst [vmem:[%s1681 + $0xb0] sm:$0xff] %v1655
      %1705 = vst [vmem:[%s1681 + $0xb8] sm:$0xff] %v1657
      %1706 = vst [vmem:[%s1681 + $0xc0] sm:$0xff] %v1661
      %1707 = vst [vmem:[%s1681 + $0xc8] sm:$0xff] %v1663
      %1708 = vst [vmem:[%s1681 + $0xd0] sm:$0xff] %v1665
      %1709 = vst [vmem:[%s1681 + $0xd8] sm:$0xff] %v1667
      %1710 = vst [vmem:[%s1681 + $0xe0] sm:$0xff] %v1671
      %1711 = vst [vmem:[%s1681 + $0xe8] sm:$0xff] %v1673
      %1712 = vst [vmem:[%s1681 + $0xf0] sm:$0xff] %v1675
      %1713 = vst [vmem:[%s1681 + $0xf8] sm:$0xff] %v1677
      %s1714 = scalar_lea.vmem %s329, 128
      %v1715 = vld [vmem:[%s1714] sm:$0xff]
      %v1716 = vld [vmem:[%s1714 + $0x8] sm:$0xff]
      %v1717 = vld [vmem:[%s1714 + $0x10] sm:$0xff]
      %v1718 = vld [vmem:[%s1714 + $0x18] sm:$0xff]
      %v1719 = vld [vmem:[%s1714 + $0x20] sm:$0xff]
      %v1720 = vld [vmem:[%s1714 + $0x28] sm:$0xff]
      %v1721 = vld [vmem:[%s1714 + $0x30] sm:$0xff]
      %v1722 = vld [vmem:[%s1714 + $0x38] sm:$0xff]
      %v1723 = vld [vmem:[%s1714 + $0x40] sm:$0xff]
      %v1724 = vld [vmem:[%s1714 + $0x48] sm:$0xff]
      %v1725 = vld [vmem:[%s1714 + $0x50] sm:$0xff]
      %v1726 = vld [vmem:[%s1714 + $0x58] sm:$0xff]
      %v1727 = vld [vmem:[%s1714 + $0x60] sm:$0xff]
      %v1728 = vld [vmem:[%s1714 + $0x68] sm:$0xff]
      %v1729 = vld [vmem:[%s1714 + $0x70] sm:$0xff]
      %v1730 = vld [vmem:[%s1714 + $0x78] sm:$0xff]
      %v1731 = vpack.c.bf16 %v1716, %v1715
      %v1732 = vpack.c.bf16 %v1718, %v1717
      %v1733 = vpack.c.bf16 %v1720, %v1719
      %v1734 = vpack.c.bf16 %v1722, %v1721
      %v1735 = vpack.c.bf16 %v1724, %v1723
      %v1736 = vpack.c.bf16 %v1726, %v1725
      %v1737 = vpack.c.bf16 %v1728, %v1727
      %v1738 = vpack.c.bf16 %v1730, %v1729
      %v1739 = vld [vmem:[%s1] sm:$0xff]
      %v1740 = vld [vmem:[%s1 + $0x8] sm:$0xff]
      %v1741 = vld [vmem:[%s1 + $0x10] sm:$0xff]
      %v1742 = vld [vmem:[%s1 + $0x18] sm:$0xff]
      %v1743 = vld [vmem:[%s1 + $0x20] sm:$0xff]
      %v1744 = vld [vmem:[%s1 + $0x28] sm:$0xff]
      %v1745 = vld [vmem:[%s1 + $0x30] sm:$0xff]
      %v1746 = vld [vmem:[%s1 + $0x38] sm:$0xff]
      %v1747 = vld [vmem:[%s1 + $0x40] sm:$0xff]
      %v1748 = vld [vmem:[%s1 + $0x48] sm:$0xff]
      %v1749 = vld [vmem:[%s1 + $0x50] sm:$0xff]
      %v1750 = vld [vmem:[%s1 + $0x58] sm:$0xff]
      %v1751 = vld [vmem:[%s1 + $0x60] sm:$0xff]
      %v1752 = vld [vmem:[%s1 + $0x68] sm:$0xff]
      %v1753 = vld [vmem:[%s1 + $0x70] sm:$0xff]
      %v1754 = vld [vmem:[%s1 + $0x78] sm:$0xff]
      %v1755 = vld [vmem:[%s2] sm:$0x3]
      %v1757 = vlaneseq
      %v1758 = vshrl.u32 %v1757, 7
      %v1759 = vsub.s32 0, %v1758
      %v1760 = vrot.slane %v1755, %v1759
      %v1761 = vlaneseq
      %v1762 = vshrl.u32 %v1761, 7
      %v1763 = vsub.s32 1, %v1762
      %v1764 = vrot.slane %v1755, %v1763
      %v1783 = vunpack.c.l.b16 %v1739
      %v1784 = vunpack.c.h.b16 %v1739
      %v1785 = vunpack.c.l.b16 %v1740
      %v1786 = vunpack.c.h.b16 %v1740
      %v1787 = vunpack.c.l.b16 %v1741
      %v1788 = vunpack.c.h.b16 %v1741
      %v1789 = vunpack.c.l.b16 %v1742
      %v1790 = vunpack.c.h.b16 %v1742
      %v1791 = vunpack.c.l.b16 %v1743
      %v1792 = vunpack.c.h.b16 %v1743
      %v1793 = vunpack.c.l.b16 %v1744
      %v1794 = vunpack.c.h.b16 %v1744
      %v1795 = vunpack.c.l.b16 %v1745
      %v1796 = vunpack.c.h.b16 %v1745
      %v1797 = vunpack.c.l.b16 %v1746
      %v1798 = vunpack.c.h.b16 %v1746
      %v1799 = vunpack.c.l.b16 %v1747
      %v1800 = vunpack.c.h.b16 %v1747
      %v1801 = vunpack.c.l.b16 %v1748
      %v1802 = vunpack.c.h.b16 %v1748
      %v1803 = vunpack.c.l.b16 %v1749
      %v1804 = vunpack.c.h.b16 %v1749
      %v1805 = vunpack.c.l.b16 %v1750
      %v1806 = vunpack.c.h.b16 %v1750
      %v1807 = vunpack.c.l.b16 %v1751
      %v1808 = vunpack.c.h.b16 %v1751
      %v1809 = vunpack.c.l.b16 %v1752
      %v1810 = vunpack.c.h.b16 %v1752
      %v1811 = vunpack.c.l.b16 %v1753
      %v1812 = vunpack.c.h.b16 %v1753
      %v1813 = vunpack.c.l.b16 %v1754
      %v1814 = vunpack.c.h.b16 %v1754
      %v1815 = vpack.c.b16 %v1785, %v1783
      %v1816 = vpack.c.b16 %v1786, %v1784
      %v1817 = vpack.c.b16 %v1789, %v1787
      %v1818 = vpack.c.b16 %v1790, %v1788
      %v1819 = vpack.c.b16 %v1793, %v1791
      %v1820 = vpack.c.b16 %v1794, %v1792
      %v1821 = vpack.c.b16 %v1797, %v1795
      %v1822 = vpack.c.b16 %v1798, %v1796
      %v1823 = vpack.c.b16 %v1801, %v1799
      %v1824 = vpack.c.b16 %v1802, %v1800
      %v1825 = vpack.c.b16 %v1805, %v1803
      %v1826 = vpack.c.b16 %v1806, %v1804
      %v1827 = vpack.c.b16 %v1809, %v1807
      %v1828 = vpack.c.b16 %v1810, %v1808
      %v1829 = vpack.c.b16 %v1813, %v1811
      %v1830 = vpack.c.b16 %v1814, %v1812
      %1847 = vmatprep.subr.bf16.mxu0 %v1830
      %1848 = vmatpush1.bf16.msra.mxu0 %v1829
      %1849 = vmatprep.subr.bf16.mxu0 %v1828
      %1850 = vmatpush1.bf16.msra.mxu0 %v1827
      %1851 = vmatprep.subr.bf16.mxu0 %v1826
      %1852 = vmatpush1.bf16.msra.mxu0 %v1825
      %1853 = vmatprep.subr.bf16.mxu0 %v1824
      %1854 = vmatpush1.bf16.msra.mxu0 %v1823
      %1855 = vmatprep.subr.bf16.mxu0 %v1822
      %1856 = vmatpush1.bf16.msra.mxu0 %v1821
      %1857 = vmatprep.subr.bf16.mxu0 %v1820
      %1858 = vmatpush1.bf16.msra.mxu0 %v1819
      %1859 = vmatprep.subr.bf16.mxu0 %v1818
      %1860 = vmatpush1.bf16.msra.mxu0 %v1817
      %1861 = vmatprep.subr.bf16.mxu0 %v1816
      %1862 = vmatpush1.bf16.msra.mxu0 %v1815
      %1863 = vmatprep.subr.bf16.mxu0 0
      %1864 = vmatpush2.bf16.msra.mxu0 0
      %1865 = vmatprep.subr.bf16.mxu0 0
      %1866 = vmatpush2.bf16.msra.mxu0 0
      %1867 = vmatprep.subr.bf16.mxu0 0
      %1868 = vmatpush2.bf16.msra.mxu0 0
      %1869 = vmatprep.subr.bf16.mxu0 0
      %1870 = vmatpush2.bf16.msra.mxu0 0
      %1871 = vmatprep.subr.bf16.mxu0 0
      %1872 = vmatpush2.bf16.msra.mxu0 0
      %1873 = vmatprep.subr.bf16.mxu0 0
      %1874 = vmatpush2.bf16.msra.mxu0 0
      %1875 = vmatprep.subr.bf16.mxu0 0
      %1876 = vmatpush2.bf16.msra.mxu0 0
      %1877 = vmatprep.subr.bf16.mxu0 0
      %1878 = vmatpush2.bf16.msra.mxu0 0
      %1879 = vmatprep.mubr.bf16.mxu0 0
      %1880 = vmatmul.mubr.bf16.gmra.mxu0 %v1731
      %v1881 = vpop.f32.mrf.mxu0
      %v1882 = vadd.f32 %v1760, %v1881
      %v1883 = vpop.f32.mrf.mxu0
      %v1884 = vadd.f32 %v1764, %v1883
      %v1885 = vpop.f32.mrf.mxu0
      %v1886 = vadd.f32 %v1760, %v1885
      %v1887 = vpop.f32.mrf.mxu0
      %v1888 = vadd.f32 %v1764, %v1887
      %1889 = vmatprep.mubr.bf16.mxu0 0
      %1890 = vmatmul.mubr.bf16.gmra.mxu0 %v1732
      %v1891 = vpop.f32.mrf.mxu0
      %v1892 = vadd.f32 %v1760, %v1891
      %v1893 = vpop.f32.mrf.mxu0
      %v1894 = vadd.f32 %v1764, %v1893
      %v1895 = vpop.f32.mrf.mxu0
      %v1896 = vadd.f32 %v1760, %v1895
      %v1897 = vpop.f32.mrf.mxu0
      %v1898 = vadd.f32 %v1764, %v1897
      %1899 = vmatprep.mubr.bf16.mxu0 0
      %1900 = vmatmul.mubr.bf16.gmra.mxu0 %v1733
      %v1901 = vpop.f32.mrf.mxu0
      %v1902 = vadd.f32 %v1760, %v1901
      %v1903 = vpop.f32.mrf.mxu0
      %v1904 = vadd.f32 %v1764, %v1903
      %v1905 = vpop.f32.mrf.mxu0
      %v1906 = vadd.f32 %v1760, %v1905
      %v1907 = vpop.f32.mrf.mxu0
      %v1908 = vadd.f32 %v1764, %v1907
      %1909 = vmatprep.mubr.bf16.mxu0 0
      %1910 = vmatmul.mubr.bf16.gmra.mxu0 %v1734
      %v1911 = vpop.f32.mrf.mxu0
      %v1912 = vadd.f32 %v1760, %v1911
      %v1913 = vpop.f32.mrf.mxu0
      %v1914 = vadd.f32 %v1764, %v1913
      %v1915 = vpop.f32.mrf.mxu0
      %v1916 = vadd.f32 %v1760, %v1915
      %v1917 = vpop.f32.mrf.mxu0
      %v1918 = vadd.f32 %v1764, %v1917
      %1919 = vmatprep.mubr.bf16.mxu0 0
      %1920 = vmatmul.mubr.bf16.gmra.mxu0 %v1735
      %v1921 = vpop.f32.mrf.mxu0
      %v1922 = vadd.f32 %v1760, %v1921
      %v1923 = vpop.f32.mrf.mxu0
      %v1924 = vadd.f32 %v1764, %v1923
      %v1925 = vpop.f32.mrf.mxu0
      %v1926 = vadd.f32 %v1760, %v1925
      %v1927 = vpop.f32.mrf.mxu0
      %v1928 = vadd.f32 %v1764, %v1927
      %1929 = vmatprep.mubr.bf16.mxu0 0
      %1930 = vmatmul.mubr.bf16.gmra.mxu0 %v1736
      %v1931 = vpop.f32.mrf.mxu0
      %v1932 = vadd.f32 %v1760, %v1931
      %v1933 = vpop.f32.mrf.mxu0
      %v1934 = vadd.f32 %v1764, %v1933
      %v1935 = vpop.f32.mrf.mxu0
      %v1936 = vadd.f32 %v1760, %v1935
      %v1937 = vpop.f32.mrf.mxu0
      %v1938 = vadd.f32 %v1764, %v1937
      %1939 = vmatprep.mubr.bf16.mxu0 0
      %1940 = vmatmul.mubr.bf16.gmra.mxu0 %v1737
      %v1941 = vpop.f32.mrf.mxu0
      %v1942 = vadd.f32 %v1760, %v1941
      %v1943 = vpop.f32.mrf.mxu0
      %v1944 = vadd.f32 %v1764, %v1943
      %v1945 = vpop.f32.mrf.mxu0
      %v1946 = vadd.f32 %v1760, %v1945
      %v1947 = vpop.f32.mrf.mxu0
      %v1948 = vadd.f32 %v1764, %v1947
      %1949 = vmatprep.mubr.bf16.mxu0 0
      %1950 = vmatmul.mubr.bf16.gmra.mxu0 %v1738
      %v1951 = vpop.f32.mrf.mxu0
      %v1952 = vadd.f32 %v1760, %v1951
      %v1953 = vpop.f32.mrf.mxu0
      %v1954 = vadd.f32 %v1764, %v1953
      %v1955 = vpop.f32.mrf.mxu0
      %v1956 = vadd.f32 %v1760, %v1955
      %v1957 = vpop.f32.mrf.mxu0
      %v1958 = vadd.f32 %v1764, %v1957
      %1959 = vdwg.mxu0
      %v1960 = vmax.f32 %v1882, 0.0
      %v1961 = vmax.f32 %v1884, 0.0
      %v1962 = vmax.f32 %v1886, 0.0
      %v1963 = vmax.f32 %v1888, 0.0
      %v1964 = vmax.f32 %v1892, 0.0
      %v1965 = vmax.f32 %v1894, 0.0
      %v1966 = vmax.f32 %v1896, 0.0
      %v1967 = vmax.f32 %v1898, 0.0
      %v1968 = vmax.f32 %v1902, 0.0
      %v1969 = vmax.f32 %v1904, 0.0
      %v1970 = vmax.f32 %v1906, 0.0
      %v1971 = vmax.f32 %v1908, 0.0
      %v1972 = vmax.f32 %v1912, 0.0
      %v1973 = vmax.f32 %v1914, 0.0
      %v1974 = vmax.f32 %v1916, 0.0
      %v1975 = vmax.f32 %v1918, 0.0
      %v1976 = vmax.f32 %v1922, 0.0
      %v1977 = vmax.f32 %v1924, 0.0
      %v1978 = vmax.f32 %v1926, 0.0
      %v1979 = vmax.f32 %v1928, 0.0
      %v1980 = vmax.f32 %v1932, 0.0
      %v1981 = vmax.f32 %v1934, 0.0
      %v1982 = vmax.f32 %v1936, 0.0
      %v1983 = vmax.f32 %v1938, 0.0
      %v1984 = vmax.f32 %v1942, 0.0
      %v1985 = vmax.f32 %v1944, 0.0
      %v1986 = vmax.f32 %v1946, 0.0
      %v1987 = vmax.f32 %v1948, 0.0
      %v1988 = vmax.f32 %v1952, 0.0
      %v1989 = vmax.f32 %v1954, 0.0
      %v1990 = vmax.f32 %v1956, 0.0
      %v1991 = vmax.f32 %v1958, 0.0
      %v1992 = vpack.c.bf16 %v1962, %v1960
      %v1993 = vpack.c.bf16 %v1963, %v1961
      %v1994 = vpack.c.bf16 %v1966, %v1964
      %v1995 = vpack.c.bf16 %v1967, %v1965
      %v1996 = vpack.c.bf16 %v1970, %v1968
      %v1997 = vpack.c.bf16 %v1971, %v1969
      %v1998 = vpack.c.bf16 %v1974, %v1972
      %v1999 = vpack.c.bf16 %v1975, %v1973
      %v2000 = vpack.c.bf16 %v1978, %v1976
      %v2001 = vpack.c.bf16 %v1979, %v1977
      %v2002 = vpack.c.bf16 %v1982, %v1980
      %v2003 = vpack.c.bf16 %v1983, %v1981
      %v2004 = vpack.c.bf16 %v1986, %v1984
      %v2005 = vpack.c.bf16 %v1987, %v1985
      %v2006 = vpack.c.bf16 %v1990, %v1988
      %v2007 = vpack.c.bf16 %v1991, %v1989
      %v2008 = vld [vmem:[%s3] sm:$0xff]
      %v2009 = vld [vmem:[%s3 + $0x8] sm:$0xff]
      %v2010 = vld [vmem:[%s3 + $0x10] sm:$0xff]
      %v2011 = vld [vmem:[%s3 + $0x18] sm:$0xff]
      %v2012 = vld [vmem:[%s3 + $0x20] sm:$0xff]
      %v2013 = vld [vmem:[%s3 + $0x28] sm:$0xff]
      %v2014 = vld [vmem:[%s3 + $0x30] sm:$0xff]
      %v2015 = vld [vmem:[%s3 + $0x38] sm:$0xff]
      %v2016 = vld [vmem:[%s3 + $0x40] sm:$0xff]
      %v2017 = vld [vmem:[%s3 + $0x48] sm:$0xff]
      %v2018 = vld [vmem:[%s3 + $0x50] sm:$0xff]
      %v2019 = vld [vmem:[%s3 + $0x58] sm:$0xff]
      %v2020 = vld [vmem:[%s3 + $0x60] sm:$0xff]
      %v2021 = vld [vmem:[%s3 + $0x68] sm:$0xff]
      %v2022 = vld [vmem:[%s3 + $0x70] sm:$0xff]
      %v2023 = vld [vmem:[%s3 + $0x78] sm:$0xff]
      %v2024 = vld [vmem:[%s3 + $0x80] sm:$0xff]
      %v2025 = vld [vmem:[%s3 + $0x88] sm:$0xff]
      %v2026 = vld [vmem:[%s3 + $0x90] sm:$0xff]
      %v2027 = vld [vmem:[%s3 + $0x98] sm:$0xff]
      %v2028 = vld [vmem:[%s3 + $0xa0] sm:$0xff]
      %v2029 = vld [vmem:[%s3 + $0xa8] sm:$0xff]
      %v2030 = vld [vmem:[%s3 + $0xb0] sm:$0xff]
      %v2031 = vld [vmem:[%s3 + $0xb8] sm:$0xff]
      %v2032 = vld [vmem:[%s3 + $0xc0] sm:$0xff]
      %v2033 = vld [vmem:[%s3 + $0xc8] sm:$0xff]
      %v2034 = vld [vmem:[%s3 + $0xd0] sm:$0xff]
      %v2035 = vld [vmem:[%s3 + $0xd8] sm:$0xff]
      %v2036 = vld [vmem:[%s3 + $0xe0] sm:$0xff]
      %v2037 = vld [vmem:[%s3 + $0xe8] sm:$0xff]
      %v2038 = vld [vmem:[%s3 + $0xf0] sm:$0xff]
      %v2039 = vld [vmem:[%s3 + $0xf8] sm:$0xff]
      %v2040 = vld [vmem:[%s4] sm:$0x3]
      %v2042 = vlaneseq
      %v2043 = vshrl.u32 %v2042, 7
      %v2044 = vsub.s32 0, %v2043
      %v2045 = vrot.slane %v2040, %v2044
      %v2046 = vlaneseq
      %v2047 = vshrl.u32 %v2046, 7
      %v2048 = vsub.s32 1, %v2047
      %v2049 = vrot.slane %v2040, %v2048
      %v2084 = vunpack.c.l.b16 %v2008
      %v2085 = vunpack.c.h.b16 %v2008
      %v2086 = vunpack.c.l.b16 %v2009
      %v2087 = vunpack.c.h.b16 %v2009
      %v2088 = vunpack.c.l.b16 %v2010
      %v2089 = vunpack.c.h.b16 %v2010
      %v2090 = vunpack.c.l.b16 %v2011
      %v2091 = vunpack.c.h.b16 %v2011
      %v2092 = vunpack.c.l.b16 %v2012
      %v2093 = vunpack.c.h.b16 %v2012
      %v2094 = vunpack.c.l.b16 %v2013
      %v2095 = vunpack.c.h.b16 %v2013
      %v2096 = vunpack.c.l.b16 %v2014
      %v2097 = vunpack.c.h.b16 %v2014
      %v2098 = vunpack.c.l.b16 %v2015
      %v2099 = vunpack.c.h.b16 %v2015
      %v2100 = vunpack.c.l.b16 %v2016
      %v2101 = vunpack.c.h.b16 %v2016
      %v2102 = vunpack.c.l.b16 %v2017
      %v2103 = vunpack.c.h.b16 %v2017
      %v2104 = vunpack.c.l.b16 %v2018
      %v2105 = vunpack.c.h.b16 %v2018
      %v2106 = vunpack.c.l.b16 %v2019
      %v2107 = vunpack.c.h.b16 %v2019
      %v2108 = vunpack.c.l.b16 %v2020
      %v2109 = vunpack.c.h.b16 %v2020
      %v2110 = vunpack.c.l.b16 %v2021
      %v2111 = vunpack.c.h.b16 %v2021
      %v2112 = vunpack.c.l.b16 %v2022
      %v2113 = vunpack.c.h.b16 %v2022
      %v2114 = vunpack.c.l.b16 %v2023
      %v2115 = vunpack.c.h.b16 %v2023
      %v2116 = vunpack.c.l.b16 %v2024
      %v2117 = vunpack.c.h.b16 %v2024
      %v2118 = vunpack.c.l.b16 %v2025
      %v2119 = vunpack.c.h.b16 %v2025
      %v2120 = vunpack.c.l.b16 %v2026
      %v2121 = vunpack.c.h.b16 %v2026
      %v2122 = vunpack.c.l.b16 %v2027
      %v2123 = vunpack.c.h.b16 %v2027
      %v2124 = vunpack.c.l.b16 %v2028
      %v2125 = vunpack.c.h.b16 %v2028
      %v2126 = vunpack.c.l.b16 %v2029
      %v2127 = vunpack.c.h.b16 %v2029
      %v2128 = vunpack.c.l.b16 %v2030
      %v2129 = vunpack.c.h.b16 %v2030
      %v2130 = vunpack.c.l.b16 %v2031
      %v2131 = vunpack.c.h.b16 %v2031
      %v2132 = vunpack.c.l.b16 %v2032
      %v2133 = vunpack.c.h.b16 %v2032
      %v2134 = vunpack.c.l.b16 %v2033
      %v2135 = vunpack.c.h.b16 %v2033
      %v2136 = vunpack.c.l.b16 %v2034
      %v2137 = vunpack.c.h.b16 %v2034
      %v2138 = vunpack.c.l.b16 %v2035
      %v2139 = vunpack.c.h.b16 %v2035
      %v2140 = vunpack.c.l.b16 %v2036
      %v2141 = vunpack.c.h.b16 %v2036
      %v2142 = vunpack.c.l.b16 %v2037
      %v2143 = vunpack.c.h.b16 %v2037
      %v2144 = vunpack.c.l.b16 %v2038
      %v2145 = vunpack.c.h.b16 %v2038
      %v2146 = vunpack.c.l.b16 %v2039
      %v2147 = vunpack.c.h.b16 %v2039
      %v2148 = vpack.c.b16 %v2086, %v2084
      %v2149 = vpack.c.b16 %v2087, %v2085
      %v2150 = vpack.c.b16 %v2090, %v2088
      %v2151 = vpack.c.b16 %v2091, %v2089
      %v2152 = vpack.c.b16 %v2094, %v2092
      %v2153 = vpack.c.b16 %v2095, %v2093
      %v2154 = vpack.c.b16 %v2098, %v2096
      %v2155 = vpack.c.b16 %v2099, %v2097
      %v2156 = vpack.c.b16 %v2102, %v2100
      %v2157 = vpack.c.b16 %v2103, %v2101
      %v2158 = vpack.c.b16 %v2106, %v2104
      %v2159 = vpack.c.b16 %v2107, %v2105
      %v2160 = vpack.c.b16 %v2110, %v2108
      %v2161 = vpack.c.b16 %v2111, %v2109
      %v2162 = vpack.c.b16 %v2114, %v2112
      %v2163 = vpack.c.b16 %v2115, %v2113
      %v2164 = vpack.c.b16 %v2118, %v2116
      %v2165 = vpack.c.b16 %v2119, %v2117
      %v2166 = vpack.c.b16 %v2122, %v2120
      %v2167 = vpack.c.b16 %v2123, %v2121
      %v2168 = vpack.c.b16 %v2126, %v2124
      %v2169 = vpack.c.b16 %v2127, %v2125
      %v2170 = vpack.c.b16 %v2130, %v2128
      %v2171 = vpack.c.b16 %v2131, %v2129
      %v2172 = vpack.c.b16 %v2134, %v2132
      %v2173 = vpack.c.b16 %v2135, %v2133
      %v2174 = vpack.c.b16 %v2138, %v2136
      %v2175 = vpack.c.b16 %v2139, %v2137
      %v2176 = vpack.c.b16 %v2142, %v2140
      %v2177 = vpack.c.b16 %v2143, %v2141
      %v2178 = vpack.c.b16 %v2146, %v2144
      %v2179 = vpack.c.b16 %v2147, %v2145
      %2212 = vmatprep.subr.bf16.mxu0 %v2163
      %2213 = vmatpush1.bf16.msra.mxu0 %v2162
      %2214 = vmatprep.subr.bf16.mxu0 %v2161
      %2215 = vmatpush1.bf16.msra.mxu0 %v2160
      %2216 = vmatprep.subr.bf16.mxu0 %v2159
      %2217 = vmatpush1.bf16.msra.mxu0 %v2158
      %2218 = vmatprep.subr.bf16.mxu0 %v2157
      %2219 = vmatpush1.bf16.msra.mxu0 %v2156
      %2220 = vmatprep.subr.bf16.mxu0 %v2155
      %2221 = vmatpush1.bf16.msra.mxu0 %v2154
      %2222 = vmatprep.subr.bf16.mxu0 %v2153
      %2223 = vmatpush1.bf16.msra.mxu0 %v2152
      %2224 = vmatprep.subr.bf16.mxu0 %v2151
      %2225 = vmatpush1.bf16.msra.mxu0 %v2150
      %2226 = vmatprep.subr.bf16.mxu0 %v2149
      %2227 = vmatpush1.bf16.msra.mxu0 %v2148
      %2228 = vmatprep.subr.bf16.mxu0 %v2179
      %2229 = vmatpush2.bf16.msra.mxu0 %v2178
      %2230 = vmatprep.subr.bf16.mxu0 %v2177
      %2231 = vmatpush2.bf16.msra.mxu0 %v2176
      %2232 = vmatprep.subr.bf16.mxu0 %v2175
      %2233 = vmatpush2.bf16.msra.mxu0 %v2174
      %2234 = vmatprep.subr.bf16.mxu0 %v2173
      %2235 = vmatpush2.bf16.msra.mxu0 %v2172
      %2236 = vmatprep.subr.bf16.mxu0 %v2171
      %2237 = vmatpush2.bf16.msra.mxu0 %v2170
      %2238 = vmatprep.subr.bf16.mxu0 %v2169
      %2239 = vmatpush2.bf16.msra.mxu0 %v2168
      %2240 = vmatprep.subr.bf16.mxu0 %v2167
      %2241 = vmatpush2.bf16.msra.mxu0 %v2166
      %2242 = vmatprep.subr.bf16.mxu0 %v2165
      %2243 = vmatpush2.bf16.msra.mxu0 %v2164
      %2244 = vmatprep.mubr.bf16.mxu0 %v1993
      %2245 = vmatmul.mubr.bf16.gmra.mxu0 %v1992
      %v2246 = vpop.f32.mrf.mxu0
      %v2247 = vadd.f32 %v2045, %v2246
      %v2248 = vpop.f32.mrf.mxu0
      %v2249 = vadd.f32 %v2049, %v2248
      %v2250 = vpop.f32.mrf.mxu0
      %v2251 = vadd.f32 %v2045, %v2250
      %v2252 = vpop.f32.mrf.mxu0
      %v2253 = vadd.f32 %v2049, %v2252
      %2254 = vmatprep.mubr.bf16.mxu0 %v1995
      %2255 = vmatmul.mubr.bf16.gmra.mxu0 %v1994
      %v2256 = vpop.f32.mrf.mxu0
      %v2257 = vadd.f32 %v2045, %v2256
      %v2258 = vpop.f32.mrf.mxu0
      %v2259 = vadd.f32 %v2049, %v2258
      %v2260 = vpop.f32.mrf.mxu0
      %v2261 = vadd.f32 %v2045, %v2260
      %v2262 = vpop.f32.mrf.mxu0
      %v2263 = vadd.f32 %v2049, %v2262
      %2264 = vmatprep.mubr.bf16.mxu0 %v1997
      %2265 = vmatmul.mubr.bf16.gmra.mxu0 %v1996
      %v2266 = vpop.f32.mrf.mxu0
      %v2267 = vadd.f32 %v2045, %v2266
      %v2268 = vpop.f32.mrf.mxu0
      %v2269 = vadd.f32 %v2049, %v2268
      %v2270 = vpop.f32.mrf.mxu0
      %v2271 = vadd.f32 %v2045, %v2270
      %v2272 = vpop.f32.mrf.mxu0
      %v2273 = vadd.f32 %v2049, %v2272
      %2274 = vmatprep.mubr.bf16.mxu0 %v1999
      %2275 = vmatmul.mubr.bf16.gmra.mxu0 %v1998
      %v2276 = vpop.f32.mrf.mxu0
      %v2277 = vadd.f32 %v2045, %v2276
      %v2278 = vpop.f32.mrf.mxu0
      %v2279 = vadd.f32 %v2049, %v2278
      %v2280 = vpop.f32.mrf.mxu0
      %v2281 = vadd.f32 %v2045, %v2280
      %v2282 = vpop.f32.mrf.mxu0
      %v2283 = vadd.f32 %v2049, %v2282
      %2284 = vmatprep.mubr.bf16.mxu0 %v2001
      %2285 = vmatmul.mubr.bf16.gmra.mxu0 %v2000
      %v2286 = vpop.f32.mrf.mxu0
      %v2287 = vadd.f32 %v2045, %v2286
      %v2288 = vpop.f32.mrf.mxu0
      %v2289 = vadd.f32 %v2049, %v2288
      %v2290 = vpop.f32.mrf.mxu0
      %v2291 = vadd.f32 %v2045, %v2290
      %v2292 = vpop.f32.mrf.mxu0
      %v2293 = vadd.f32 %v2049, %v2292
      %2294 = vmatprep.mubr.bf16.mxu0 %v2003
      %2295 = vmatmul.mubr.bf16.gmra.mxu0 %v2002
      %v2296 = vpop.f32.mrf.mxu0
      %v2297 = vadd.f32 %v2045, %v2296
      %v2298 = vpop.f32.mrf.mxu0
      %v2299 = vadd.f32 %v2049, %v2298
      %v2300 = vpop.f32.mrf.mxu0
      %v2301 = vadd.f32 %v2045, %v2300
      %v2302 = vpop.f32.mrf.mxu0
      %v2303 = vadd.f32 %v2049, %v2302
      %2304 = vmatprep.mubr.bf16.mxu0 %v2005
      %2305 = vmatmul.mubr.bf16.gmra.mxu0 %v2004
      %v2306 = vpop.f32.mrf.mxu0
      %v2307 = vadd.f32 %v2045, %v2306
      %v2308 = vpop.f32.mrf.mxu0
      %v2309 = vadd.f32 %v2049, %v2308
      %v2310 = vpop.f32.mrf.mxu0
      %v2311 = vadd.f32 %v2045, %v2310
      %v2312 = vpop.f32.mrf.mxu0
      %v2313 = vadd.f32 %v2049, %v2312
      %2314 = vmatprep.mubr.bf16.mxu0 %v2007
      %2315 = vmatmul.mubr.bf16.gmra.mxu0 %v2006
      %v2316 = vpop.f32.mrf.mxu0
      %v2317 = vadd.f32 %v2045, %v2316
      %v2318 = vpop.f32.mrf.mxu0
      %v2319 = vadd.f32 %v2049, %v2318
      %v2320 = vpop.f32.mrf.mxu0
      %v2321 = vadd.f32 %v2045, %v2320
      %v2322 = vpop.f32.mrf.mxu0
      %v2323 = vadd.f32 %v2049, %v2322
      %2324 = vdwg.mxu0
      %v2325 = vmax.f32 %v2247, 0.0
      %v2326 = vmax.f32 %v2249, 0.0
      %v2327 = vmax.f32 %v2251, 0.0
      %v2328 = vmax.f32 %v2253, 0.0
      %v2329 = vmax.f32 %v2257, 0.0
      %v2330 = vmax.f32 %v2259, 0.0
      %v2331 = vmax.f32 %v2261, 0.0
      %v2332 = vmax.f32 %v2263, 0.0
      %v2333 = vmax.f32 %v2267, 0.0
      %v2334 = vmax.f32 %v2269, 0.0
      %v2335 = vmax.f32 %v2271, 0.0
      %v2336 = vmax.f32 %v2273, 0.0
      %v2337 = vmax.f32 %v2277, 0.0
      %v2338 = vmax.f32 %v2279, 0.0
      %v2339 = vmax.f32 %v2281, 0.0
      %v2340 = vmax.f32 %v2283, 0.0
      %v2341 = vmax.f32 %v2287, 0.0
      %v2342 = vmax.f32 %v2289, 0.0
      %v2343 = vmax.f32 %v2291, 0.0
      %v2344 = vmax.f32 %v2293, 0.0
      %v2345 = vmax.f32 %v2297, 0.0
      %v2346 = vmax.f32 %v2299, 0.0
      %v2347 = vmax.f32 %v2301, 0.0
      %v2348 = vmax.f32 %v2303, 0.0
      %v2349 = vmax.f32 %v2307, 0.0
      %v2350 = vmax.f32 %v2309, 0.0
      %v2351 = vmax.f32 %v2311, 0.0
      %v2352 = vmax.f32 %v2313, 0.0
      %v2353 = vmax.f32 %v2317, 0.0
      %v2354 = vmax.f32 %v2319, 0.0
      %v2355 = vmax.f32 %v2321, 0.0
      %v2356 = vmax.f32 %v2323, 0.0
      %v2357 = vpack.c.bf16 %v2327, %v2325
      %v2358 = vpack.c.bf16 %v2328, %v2326
      %v2359 = vpack.c.bf16 %v2331, %v2329
      %v2360 = vpack.c.bf16 %v2332, %v2330
      %v2361 = vpack.c.bf16 %v2335, %v2333
      %v2362 = vpack.c.bf16 %v2336, %v2334
      %v2363 = vpack.c.bf16 %v2339, %v2337
      %v2364 = vpack.c.bf16 %v2340, %v2338
      %v2365 = vpack.c.bf16 %v2343, %v2341
      %v2366 = vpack.c.bf16 %v2344, %v2342
      %v2367 = vpack.c.bf16 %v2347, %v2345
      %v2368 = vpack.c.bf16 %v2348, %v2346
      %v2369 = vpack.c.bf16 %v2351, %v2349
      %v2370 = vpack.c.bf16 %v2352, %v2350
      %v2371 = vpack.c.bf16 %v2355, %v2353
      %v2372 = vpack.c.bf16 %v2356, %v2354
      %v2373 = vld [vmem:[%s5] sm:$0xff]
      %v2374 = vld [vmem:[%s5 + $0x8] sm:$0xff]
      %v2375 = vld [vmem:[%s5 + $0x10] sm:$0xff]
      %v2376 = vld [vmem:[%s5 + $0x18] sm:$0xff]
      %v2377 = vld [vmem:[%s5 + $0x20] sm:$0xff]
      %v2378 = vld [vmem:[%s5 + $0x28] sm:$0xff]
      %v2379 = vld [vmem:[%s5 + $0x30] sm:$0xff]
      %v2380 = vld [vmem:[%s5 + $0x38] sm:$0xff]
      %v2381 = vld [vmem:[%s5 + $0x40] sm:$0xff]
      %v2382 = vld [vmem:[%s5 + $0x48] sm:$0xff]
      %v2383 = vld [vmem:[%s5 + $0x50] sm:$0xff]
      %v2384 = vld [vmem:[%s5 + $0x58] sm:$0xff]
      %v2385 = vld [vmem:[%s5 + $0x60] sm:$0xff]
      %v2386 = vld [vmem:[%s5 + $0x68] sm:$0xff]
      %v2387 = vld [vmem:[%s5 + $0x70] sm:$0xff]
      %v2388 = vld [vmem:[%s5 + $0x78] sm:$0xff]
      %v2389 = vld [vmem:[%s5 + $0x80] sm:$0xff]
      %v2390 = vld [vmem:[%s5 + $0x88] sm:$0xff]
      %v2391 = vld [vmem:[%s5 + $0x90] sm:$0xff]
      %v2392 = vld [vmem:[%s5 + $0x98] sm:$0xff]
      %v2393 = vld [vmem:[%s5 + $0xa0] sm:$0xff]
      %v2394 = vld [vmem:[%s5 + $0xa8] sm:$0xff]
      %v2395 = vld [vmem:[%s5 + $0xb0] sm:$0xff]
      %v2396 = vld [vmem:[%s5 + $0xb8] sm:$0xff]
      %v2397 = vld [vmem:[%s5 + $0xc0] sm:$0xff]
      %v2398 = vld [vmem:[%s5 + $0xc8] sm:$0xff]
      %v2399 = vld [vmem:[%s5 + $0xd0] sm:$0xff]
      %v2400 = vld [vmem:[%s5 + $0xd8] sm:$0xff]
      %v2401 = vld [vmem:[%s5 + $0xe0] sm:$0xff]
      %v2402 = vld [vmem:[%s5 + $0xe8] sm:$0xff]
      %v2403 = vld [vmem:[%s5 + $0xf0] sm:$0xff]
      %v2404 = vld [vmem:[%s5 + $0xf8] sm:$0xff]
      %v2405 = vld [vmem:[%s6] sm:$0x3]
      %v2407 = vlaneseq
      %v2408 = vshrl.u32 %v2407, 7
      %v2409 = vsub.s32 0, %v2408
      %v2410 = vrot.slane %v2405, %v2409
      %v2411 = vlaneseq
      %v2412 = vshrl.u32 %v2411, 7
      %v2413 = vsub.s32 1, %v2412
      %v2414 = vrot.slane %v2405, %v2413
      %v2449 = vunpack.c.l.b16 %v2373
      %v2450 = vunpack.c.h.b16 %v2373
      %v2451 = vunpack.c.l.b16 %v2374
      %v2452 = vunpack.c.h.b16 %v2374
      %v2453 = vunpack.c.l.b16 %v2375
      %v2454 = vunpack.c.h.b16 %v2375
      %v2455 = vunpack.c.l.b16 %v2376
      %v2456 = vunpack.c.h.b16 %v2376
      %v2457 = vunpack.c.l.b16 %v2377
      %v2458 = vunpack.c.h.b16 %v2377
      %v2459 = vunpack.c.l.b16 %v2378
      %v2460 = vunpack.c.h.b16 %v2378
      %v2461 = vunpack.c.l.b16 %v2379
      %v2462 = vunpack.c.h.b16 %v2379
      %v2463 = vunpack.c.l.b16 %v2380
      %v2464 = vunpack.c.h.b16 %v2380
      %v2465 = vunpack.c.l.b16 %v2381
      %v2466 = vunpack.c.h.b16 %v2381
      %v2467 = vunpack.c.l.b16 %v2382
      %v2468 = vunpack.c.h.b16 %v2382
      %v2469 = vunpack.c.l.b16 %v2383
      %v2470 = vunpack.c.h.b16 %v2383
      %v2471 = vunpack.c.l.b16 %v2384
      %v2472 = vunpack.c.h.b16 %v2384
      %v2473 = vunpack.c.l.b16 %v2385
      %v2474 = vunpack.c.h.b16 %v2385
      %v2475 = vunpack.c.l.b16 %v2386
      %v2476 = vunpack.c.h.b16 %v2386
      %v2477 = vunpack.c.l.b16 %v2387
      %v2478 = vunpack.c.h.b16 %v2387
      %v2479 = vunpack.c.l.b16 %v2388
      %v2480 = vunpack.c.h.b16 %v2388
      %v2481 = vunpack.c.l.b16 %v2389
      %v2482 = vunpack.c.h.b16 %v2389
      %v2483 = vunpack.c.l.b16 %v2390
      %v2484 = vunpack.c.h.b16 %v2390
      %v2485 = vunpack.c.l.b16 %v2391
      %v2486 = vunpack.c.h.b16 %v2391
      %v2487 = vunpack.c.l.b16 %v2392
      %v2488 = vunpack.c.h.b16 %v2392
      %v2489 = vunpack.c.l.b16 %v2393
      %v2490 = vunpack.c.h.b16 %v2393
      %v2491 = vunpack.c.l.b16 %v2394
      %v2492 = vunpack.c.h.b16 %v2394
      %v2493 = vunpack.c.l.b16 %v2395
      %v2494 = vunpack.c.h.b16 %v2395
      %v2495 = vunpack.c.l.b16 %v2396
      %v2496 = vunpack.c.h.b16 %v2396
      %v2497 = vunpack.c.l.b16 %v2397
      %v2498 = vunpack.c.h.b16 %v2397
      %v2499 = vunpack.c.l.b16 %v2398
      %v2500 = vunpack.c.h.b16 %v2398
      %v2501 = vunpack.c.l.b16 %v2399
      %v2502 = vunpack.c.h.b16 %v2399
      %v2503 = vunpack.c.l.b16 %v2400
      %v2504 = vunpack.c.h.b16 %v2400
      %v2505 = vunpack.c.l.b16 %v2401
      %v2506 = vunpack.c.h.b16 %v2401
      %v2507 = vunpack.c.l.b16 %v2402
      %v2508 = vunpack.c.h.b16 %v2402
      %v2509 = vunpack.c.l.b16 %v2403
      %v2510 = vunpack.c.h.b16 %v2403
      %v2511 = vunpack.c.l.b16 %v2404
      %v2512 = vunpack.c.h.b16 %v2404
      %v2513 = vpack.c.b16 %v2451, %v2449
      %v2514 = vpack.c.b16 %v2452, %v2450
      %v2515 = vpack.c.b16 %v2455, %v2453
      %v2516 = vpack.c.b16 %v2456, %v2454
      %v2517 = vpack.c.b16 %v2459, %v2457
      %v2518 = vpack.c.b16 %v2460, %v2458
      %v2519 = vpack.c.b16 %v2463, %v2461
      %v2520 = vpack.c.b16 %v2464, %v2462
      %v2521 = vpack.c.b16 %v2467, %v2465
      %v2522 = vpack.c.b16 %v2468, %v2466
      %v2523 = vpack.c.b16 %v2471, %v2469
      %v2524 = vpack.c.b16 %v2472, %v2470
      %v2525 = vpack.c.b16 %v2475, %v2473
      %v2526 = vpack.c.b16 %v2476, %v2474
      %v2527 = vpack.c.b16 %v2479, %v2477
      %v2528 = vpack.c.b16 %v2480, %v2478
      %v2529 = vpack.c.b16 %v2483, %v2481
      %v2530 = vpack.c.b16 %v2484, %v2482
      %v2531 = vpack.c.b16 %v2487, %v2485
      %v2532 = vpack.c.b16 %v2488, %v2486
      %v2533 = vpack.c.b16 %v2491, %v2489
      %v2534 = vpack.c.b16 %v2492, %v2490
      %v2535 = vpack.c.b16 %v2495, %v2493
      %v2536 = vpack.c.b16 %v2496, %v2494
      %v2537 = vpack.c.b16 %v2499, %v2497
      %v2538 = vpack.c.b16 %v2500, %v2498
      %v2539 = vpack.c.b16 %v2503, %v2501
      %v2540 = vpack.c.b16 %v2504, %v2502
      %v2541 = vpack.c.b16 %v2507, %v2505
      %v2542 = vpack.c.b16 %v2508, %v2506
      %v2543 = vpack.c.b16 %v2511, %v2509
      %v2544 = vpack.c.b16 %v2512, %v2510
      %2577 = vmatprep.subr.bf16.mxu0 %v2528
      %2578 = vmatpush1.bf16.msra.mxu0 %v2527
      %2579 = vmatprep.subr.bf16.mxu0 %v2526
      %2580 = vmatpush1.bf16.msra.mxu0 %v2525
      %2581 = vmatprep.subr.bf16.mxu0 %v2524
      %2582 = vmatpush1.bf16.msra.mxu0 %v2523
      %2583 = vmatprep.subr.bf16.mxu0 %v2522
      %2584 = vmatpush1.bf16.msra.mxu0 %v2521
      %2585 = vmatprep.subr.bf16.mxu0 %v2520
      %2586 = vmatpush1.bf16.msra.mxu0 %v2519
      %2587 = vmatprep.subr.bf16.mxu0 %v2518
      %2588 = vmatpush1.bf16.msra.mxu0 %v2517
      %2589 = vmatprep.subr.bf16.mxu0 %v2516
      %2590 = vmatpush1.bf16.msra.mxu0 %v2515
      %2591 = vmatprep.subr.bf16.mxu0 %v2514
      %2592 = vmatpush1.bf16.msra.mxu0 %v2513
      %2593 = vmatprep.subr.bf16.mxu0 %v2544
      %2594 = vmatpush2.bf16.msra.mxu0 %v2543
      %2595 = vmatprep.subr.bf16.mxu0 %v2542
      %2596 = vmatpush2.bf16.msra.mxu0 %v2541
      %2597 = vmatprep.subr.bf16.mxu0 %v2540
      %2598 = vmatpush2.bf16.msra.mxu0 %v2539
      %2599 = vmatprep.subr.bf16.mxu0 %v2538
      %2600 = vmatpush2.bf16.msra.mxu0 %v2537
      %2601 = vmatprep.subr.bf16.mxu0 %v2536
      %2602 = vmatpush2.bf16.msra.mxu0 %v2535
      %2603 = vmatprep.subr.bf16.mxu0 %v2534
      %2604 = vmatpush2.bf16.msra.mxu0 %v2533
      %2605 = vmatprep.subr.bf16.mxu0 %v2532
      %2606 = vmatpush2.bf16.msra.mxu0 %v2531
      %2607 = vmatprep.subr.bf16.mxu0 %v2530
      %2608 = vmatpush2.bf16.msra.mxu0 %v2529
      %2609 = vmatprep.mubr.bf16.mxu0 %v2358
      %2610 = vmatmul.mubr.bf16.gmra.mxu0 %v2357
      %v2611 = vpop.f32.mrf.mxu0
      %v2612 = vadd.f32 %v2410, %v2611
      %v2613 = vpop.f32.mrf.mxu0
      %v2614 = vadd.f32 %v2414, %v2613
      %v2615 = vpop.f32.mrf.mxu0
      %v2616 = vadd.f32 %v2410, %v2615
      %v2617 = vpop.f32.mrf.mxu0
      %v2618 = vadd.f32 %v2414, %v2617
      %2619 = vmatprep.mubr.bf16.mxu0 %v2360
      %2620 = vmatmul.mubr.bf16.gmra.mxu0 %v2359
      %v2621 = vpop.f32.mrf.mxu0
      %v2622 = vadd.f32 %v2410, %v2621
      %v2623 = vpop.f32.mrf.mxu0
      %v2624 = vadd.f32 %v2414, %v2623
      %v2625 = vpop.f32.mrf.mxu0
      %v2626 = vadd.f32 %v2410, %v2625
      %v2627 = vpop.f32.mrf.mxu0
      %v2628 = vadd.f32 %v2414, %v2627
      %2629 = vmatprep.mubr.bf16.mxu0 %v2362
      %2630 = vmatmul.mubr.bf16.gmra.mxu0 %v2361
      %v2631 = vpop.f32.mrf.mxu0
      %v2632 = vadd.f32 %v2410, %v2631
      %v2633 = vpop.f32.mrf.mxu0
      %v2634 = vadd.f32 %v2414, %v2633
      %v2635 = vpop.f32.mrf.mxu0
      %v2636 = vadd.f32 %v2410, %v2635
      %v2637 = vpop.f32.mrf.mxu0
      %v2638 = vadd.f32 %v2414, %v2637
      %2639 = vmatprep.mubr.bf16.mxu0 %v2364
      %2640 = vmatmul.mubr.bf16.gmra.mxu0 %v2363
      %v2641 = vpop.f32.mrf.mxu0
      %v2642 = vadd.f32 %v2410, %v2641
      %v2643 = vpop.f32.mrf.mxu0
      %v2644 = vadd.f32 %v2414, %v2643
      %v2645 = vpop.f32.mrf.mxu0
      %v2646 = vadd.f32 %v2410, %v2645
      %v2647 = vpop.f32.mrf.mxu0
      %v2648 = vadd.f32 %v2414, %v2647
      %2649 = vmatprep.mubr.bf16.mxu0 %v2366
      %2650 = vmatmul.mubr.bf16.gmra.mxu0 %v2365
      %v2651 = vpop.f32.mrf.mxu0
      %v2652 = vadd.f32 %v2410, %v2651
      %v2653 = vpop.f32.mrf.mxu0
      %v2654 = vadd.f32 %v2414, %v2653
      %v2655 = vpop.f32.mrf.mxu0
      %v2656 = vadd.f32 %v2410, %v2655
      %v2657 = vpop.f32.mrf.mxu0
      %v2658 = vadd.f32 %v2414, %v2657
      %2659 = vmatprep.mubr.bf16.mxu0 %v2368
      %2660 = vmatmul.mubr.bf16.gmra.mxu0 %v2367
      %v2661 = vpop.f32.mrf.mxu0
      %v2662 = vadd.f32 %v2410, %v2661
      %v2663 = vpop.f32.mrf.mxu0
      %v2664 = vadd.f32 %v2414, %v2663
      %v2665 = vpop.f32.mrf.mxu0
      %v2666 = vadd.f32 %v2410, %v2665
      %v2667 = vpop.f32.mrf.mxu0
      %v2668 = vadd.f32 %v2414, %v2667
      %2669 = vmatprep.mubr.bf16.mxu0 %v2370
      %2670 = vmatmul.mubr.bf16.gmra.mxu0 %v2369
      %v2671 = vpop.f32.mrf.mxu0
      %v2672 = vadd.f32 %v2410, %v2671
      %v2673 = vpop.f32.mrf.mxu0
      %v2674 = vadd.f32 %v2414, %v2673
      %v2675 = vpop.f32.mrf.mxu0
      %v2676 = vadd.f32 %v2410, %v2675
      %v2677 = vpop.f32.mrf.mxu0
      %v2678 = vadd.f32 %v2414, %v2677
      %2679 = vmatprep.mubr.bf16.mxu0 %v2372
      %2680 = vmatmul.mubr.bf16.gmra.mxu0 %v2371
      %v2681 = vpop.f32.mrf.mxu0
      %v2682 = vadd.f32 %v2410, %v2681
      %v2683 = vpop.f32.mrf.mxu0
      %v2684 = vadd.f32 %v2414, %v2683
      %v2685 = vpop.f32.mrf.mxu0
      %v2686 = vadd.f32 %v2410, %v2685
      %v2687 = vpop.f32.mrf.mxu0
      %v2688 = vadd.f32 %v2414, %v2687
      %2689 = vdwg.mxu0
      %v2690 = vmax.f32 %v2612, 0.0
      %v2691 = vmax.f32 %v2614, 0.0
      %v2692 = vmax.f32 %v2616, 0.0
      %v2693 = vmax.f32 %v2618, 0.0
      %v2694 = vmax.f32 %v2622, 0.0
      %v2695 = vmax.f32 %v2624, 0.0
      %v2696 = vmax.f32 %v2626, 0.0
      %v2697 = vmax.f32 %v2628, 0.0
      %v2698 = vmax.f32 %v2632, 0.0
      %v2699 = vmax.f32 %v2634, 0.0
      %v2700 = vmax.f32 %v2636, 0.0
      %v2701 = vmax.f32 %v2638, 0.0
      %v2702 = vmax.f32 %v2642, 0.0
      %v2703 = vmax.f32 %v2644, 0.0
      %v2704 = vmax.f32 %v2646, 0.0
      %v2705 = vmax.f32 %v2648, 0.0
      %v2706 = vmax.f32 %v2652, 0.0
      %v2707 = vmax.f32 %v2654, 0.0
      %v2708 = vmax.f32 %v2656, 0.0
      %v2709 = vmax.f32 %v2658, 0.0
      %v2710 = vmax.f32 %v2662, 0.0
      %v2711 = vmax.f32 %v2664, 0.0
      %v2712 = vmax.f32 %v2666, 0.0
      %v2713 = vmax.f32 %v2668, 0.0
      %v2714 = vmax.f32 %v2672, 0.0
      %v2715 = vmax.f32 %v2674, 0.0
      %v2716 = vmax.f32 %v2676, 0.0
      %v2717 = vmax.f32 %v2678, 0.0
      %v2718 = vmax.f32 %v2682, 0.0
      %v2719 = vmax.f32 %v2684, 0.0
      %v2720 = vmax.f32 %v2686, 0.0
      %v2721 = vmax.f32 %v2688, 0.0
      %v2722 = vpack.c.bf16 %v2692, %v2690
      %v2723 = vpack.c.bf16 %v2693, %v2691
      %v2724 = vpack.c.bf16 %v2696, %v2694
      %v2725 = vpack.c.bf16 %v2697, %v2695
      %v2726 = vpack.c.bf16 %v2700, %v2698
      %v2727 = vpack.c.bf16 %v2701, %v2699
      %v2728 = vpack.c.bf16 %v2704, %v2702
      %v2729 = vpack.c.bf16 %v2705, %v2703
      %v2730 = vpack.c.bf16 %v2708, %v2706
      %v2731 = vpack.c.bf16 %v2709, %v2707
      %v2732 = vpack.c.bf16 %v2712, %v2710
      %v2733 = vpack.c.bf16 %v2713, %v2711
      %v2734 = vpack.c.bf16 %v2716, %v2714
      %v2735 = vpack.c.bf16 %v2717, %v2715
      %v2736 = vpack.c.bf16 %v2720, %v2718
      %v2737 = vpack.c.bf16 %v2721, %v2719
      %v2738 = vld [vmem:[%s7] sm:$0xff]
      %v2739 = vld [vmem:[%s7 + $0x8] sm:$0xff]
      %v2740 = vld [vmem:[%s7 + $0x10] sm:$0xff]
      %v2741 = vld [vmem:[%s7 + $0x18] sm:$0xff]
      %v2742 = vld [vmem:[%s7 + $0x20] sm:$0xff]
      %v2743 = vld [vmem:[%s7 + $0x28] sm:$0xff]
      %v2744 = vld [vmem:[%s7 + $0x30] sm:$0xff]
      %v2745 = vld [vmem:[%s7 + $0x38] sm:$0xff]
      %v2746 = vld [vmem:[%s7 + $0x40] sm:$0xff]
      %v2747 = vld [vmem:[%s7 + $0x48] sm:$0xff]
      %v2748 = vld [vmem:[%s7 + $0x50] sm:$0xff]
      %v2749 = vld [vmem:[%s7 + $0x58] sm:$0xff]
      %v2750 = vld [vmem:[%s7 + $0x60] sm:$0xff]
      %v2751 = vld [vmem:[%s7 + $0x68] sm:$0xff]
      %v2752 = vld [vmem:[%s7 + $0x70] sm:$0xff]
      %v2753 = vld [vmem:[%s7 + $0x78] sm:$0xff]
      %v2754 = vld [vmem:[%s7 + $0x80] sm:$0xff]
      %v2755 = vld [vmem:[%s7 + $0x88] sm:$0xff]
      %v2756 = vld [vmem:[%s7 + $0x90] sm:$0xff]
      %v2757 = vld [vmem:[%s7 + $0x98] sm:$0xff]
      %v2758 = vld [vmem:[%s7 + $0xa0] sm:$0xff]
      %v2759 = vld [vmem:[%s7 + $0xa8] sm:$0xff]
      %v2760 = vld [vmem:[%s7 + $0xb0] sm:$0xff]
      %v2761 = vld [vmem:[%s7 + $0xb8] sm:$0xff]
      %v2762 = vld [vmem:[%s7 + $0xc0] sm:$0xff]
      %v2763 = vld [vmem:[%s7 + $0xc8] sm:$0xff]
      %v2764 = vld [vmem:[%s7 + $0xd0] sm:$0xff]
      %v2765 = vld [vmem:[%s7 + $0xd8] sm:$0xff]
      %v2766 = vld [vmem:[%s7 + $0xe0] sm:$0xff]
      %v2767 = vld [vmem:[%s7 + $0xe8] sm:$0xff]
      %v2768 = vld [vmem:[%s7 + $0xf0] sm:$0xff]
      %v2769 = vld [vmem:[%s7 + $0xf8] sm:$0xff]
      %v2770 = vld [vmem:[%s8] sm:$0x3]
      %v2772 = vlaneseq
      %v2773 = vshrl.u32 %v2772, 7
      %v2774 = vsub.s32 0, %v2773
      %v2775 = vrot.slane %v2770, %v2774
      %v2776 = vlaneseq
      %v2777 = vshrl.u32 %v2776, 7
      %v2778 = vsub.s32 1, %v2777
      %v2779 = vrot.slane %v2770, %v2778
      %v2814 = vunpack.c.l.b16 %v2738
      %v2815 = vunpack.c.h.b16 %v2738
      %v2816 = vunpack.c.l.b16 %v2739
      %v2817 = vunpack.c.h.b16 %v2739
      %v2818 = vunpack.c.l.b16 %v2740
      %v2819 = vunpack.c.h.b16 %v2740
      %v2820 = vunpack.c.l.b16 %v2741
      %v2821 = vunpack.c.h.b16 %v2741
      %v2822 = vunpack.c.l.b16 %v2742
      %v2823 = vunpack.c.h.b16 %v2742
      %v2824 = vunpack.c.l.b16 %v2743
      %v2825 = vunpack.c.h.b16 %v2743
      %v2826 = vunpack.c.l.b16 %v2744
      %v2827 = vunpack.c.h.b16 %v2744
      %v2828 = vunpack.c.l.b16 %v2745
      %v2829 = vunpack.c.h.b16 %v2745
      %v2830 = vunpack.c.l.b16 %v2746
      %v2831 = vunpack.c.h.b16 %v2746
      %v2832 = vunpack.c.l.b16 %v2747
      %v2833 = vunpack.c.h.b16 %v2747
      %v2834 = vunpack.c.l.b16 %v2748
      %v2835 = vunpack.c.h.b16 %v2748
      %v2836 = vunpack.c.l.b16 %v2749
      %v2837 = vunpack.c.h.b16 %v2749
      %v2838 = vunpack.c.l.b16 %v2750
      %v2839 = vunpack.c.h.b16 %v2750
      %v2840 = vunpack.c.l.b16 %v2751
      %v2841 = vunpack.c.h.b16 %v2751
      %v2842 = vunpack.c.l.b16 %v2752
      %v2843 = vunpack.c.h.b16 %v2752
      %v2844 = vunpack.c.l.b16 %v2753
      %v2845 = vunpack.c.h.b16 %v2753
      %v2846 = vunpack.c.l.b16 %v2754
      %v2847 = vunpack.c.h.b16 %v2754
      %v2848 = vunpack.c.l.b16 %v2755
      %v2849 = vunpack.c.h.b16 %v2755
      %v2850 = vunpack.c.l.b16 %v2756
      %v2851 = vunpack.c.h.b16 %v2756
      %v2852 = vunpack.c.l.b16 %v2757
      %v2853 = vunpack.c.h.b16 %v2757
      %v2854 = vunpack.c.l.b16 %v2758
      %v2855 = vunpack.c.h.b16 %v2758
      %v2856 = vunpack.c.l.b16 %v2759
      %v2857 = vunpack.c.h.b16 %v2759
      %v2858 = vunpack.c.l.b16 %v2760
      %v2859 = vunpack.c.h.b16 %v2760
      %v2860 = vunpack.c.l.b16 %v2761
      %v2861 = vunpack.c.h.b16 %v2761
      %v2862 = vunpack.c.l.b16 %v2762
      %v2863 = vunpack.c.h.b16 %v2762
      %v2864 = vunpack.c.l.b16 %v2763
      %v2865 = vunpack.c.h.b16 %v2763
      %v2866 = vunpack.c.l.b16 %v2764
      %v2867 = vunpack.c.h.b16 %v2764
      %v2868 = vunpack.c.l.b16 %v2765
      %v2869 = vunpack.c.h.b16 %v2765
      %v2870 = vunpack.c.l.b16 %v2766
      %v2871 = vunpack.c.h.b16 %v2766
      %v2872 = vunpack.c.l.b16 %v2767
      %v2873 = vunpack.c.h.b16 %v2767
      %v2874 = vunpack.c.l.b16 %v2768
      %v2875 = vunpack.c.h.b16 %v2768
      %v2876 = vunpack.c.l.b16 %v2769
      %v2877 = vunpack.c.h.b16 %v2769
      %v2878 = vpack.c.b16 %v2816, %v2814
      %v2879 = vpack.c.b16 %v2817, %v2815
      %v2880 = vpack.c.b16 %v2820, %v2818
      %v2881 = vpack.c.b16 %v2821, %v2819
      %v2882 = vpack.c.b16 %v2824, %v2822
      %v2883 = vpack.c.b16 %v2825, %v2823
      %v2884 = vpack.c.b16 %v2828, %v2826
      %v2885 = vpack.c.b16 %v2829, %v2827
      %v2886 = vpack.c.b16 %v2832, %v2830
      %v2887 = vpack.c.b16 %v2833, %v2831
      %v2888 = vpack.c.b16 %v2836, %v2834
      %v2889 = vpack.c.b16 %v2837, %v2835
      %v2890 = vpack.c.b16 %v2840, %v2838
      %v2891 = vpack.c.b16 %v2841, %v2839
      %v2892 = vpack.c.b16 %v2844, %v2842
      %v2893 = vpack.c.b16 %v2845, %v2843
      %v2894 = vpack.c.b16 %v2848, %v2846
      %v2895 = vpack.c.b16 %v2849, %v2847
      %v2896 = vpack.c.b16 %v2852, %v2850
      %v2897 = vpack.c.b16 %v2853, %v2851
      %v2898 = vpack.c.b16 %v2856, %v2854
      %v2899 = vpack.c.b16 %v2857, %v2855
      %v2900 = vpack.c.b16 %v2860, %v2858
      %v2901 = vpack.c.b16 %v2861, %v2859
      %v2902 = vpack.c.b16 %v2864, %v2862
      %v2903 = vpack.c.b16 %v2865, %v2863
      %v2904 = vpack.c.b16 %v2868, %v2866
      %v2905 = vpack.c.b16 %v2869, %v2867
      %v2906 = vpack.c.b16 %v2872, %v2870
      %v2907 = vpack.c.b16 %v2873, %v2871
      %v2908 = vpack.c.b16 %v2876, %v2874
      %v2909 = vpack.c.b16 %v2877, %v2875
      %2942 = vmatprep.subr.bf16.mxu0 %v2893
      %2943 = vmatpush1.bf16.msra.mxu0 %v2892
      %2944 = vmatprep.subr.bf16.mxu0 %v2891
      %2945 = vmatpush1.bf16.msra.mxu0 %v2890
      %2946 = vmatprep.subr.bf16.mxu0 %v2889
      %2947 = vmatpush1.bf16.msra.mxu0 %v2888
      %2948 = vmatprep.subr.bf16.mxu0 %v2887
      %2949 = vmatpush1.bf16.msra.mxu0 %v2886
      %2950 = vmatprep.subr.bf16.mxu0 %v2885
      %2951 = vmatpush1.bf16.msra.mxu0 %v2884
      %2952 = vmatprep.subr.bf16.mxu0 %v2883
      %2953 = vmatpush1.bf16.msra.mxu0 %v2882
      %2954 = vmatprep.subr.bf16.mxu0 %v2881
      %2955 = vmatpush1.bf16.msra.mxu0 %v2880
      %2956 = vmatprep.subr.bf16.mxu0 %v2879
      %2957 = vmatpush1.bf16.msra.mxu0 %v2878
      %2958 = vmatprep.subr.bf16.mxu0 %v2909
      %2959 = vmatpush2.bf16.msra.mxu0 %v2908
      %2960 = vmatprep.subr.bf16.mxu0 %v2907
      %2961 = vmatpush2.bf16.msra.mxu0 %v2906
      %2962 = vmatprep.subr.bf16.mxu0 %v2905
      %2963 = vmatpush2.bf16.msra.mxu0 %v2904
      %2964 = vmatprep.subr.bf16.mxu0 %v2903
      %2965 = vmatpush2.bf16.msra.mxu0 %v2902
      %2966 = vmatprep.subr.bf16.mxu0 %v2901
      %2967 = vmatpush2.bf16.msra.mxu0 %v2900
      %2968 = vmatprep.subr.bf16.mxu0 %v2899
      %2969 = vmatpush2.bf16.msra.mxu0 %v2898
      %2970 = vmatprep.subr.bf16.mxu0 %v2897
      %2971 = vmatpush2.bf16.msra.mxu0 %v2896
      %2972 = vmatprep.subr.bf16.mxu0 %v2895
      %2973 = vmatpush2.bf16.msra.mxu0 %v2894
      %2974 = vmatprep.mubr.bf16.mxu0 %v2723
      %2975 = vmatmul.mubr.bf16.gmra.mxu0 %v2722
      %v2976 = vpop.f32.mrf.mxu0
      %v2977 = vadd.f32 %v2775, %v2976
      %v2978 = vpop.f32.mrf.mxu0
      %v2979 = vadd.f32 %v2779, %v2978
      %v2980 = vpop.f32.mrf.mxu0
      %v2981 = vadd.f32 %v2775, %v2980
      %v2982 = vpop.f32.mrf.mxu0
      %v2983 = vadd.f32 %v2779, %v2982
      %2984 = vmatprep.mubr.bf16.mxu0 %v2725
      %2985 = vmatmul.mubr.bf16.gmra.mxu0 %v2724
      %v2986 = vpop.f32.mrf.mxu0
      %v2987 = vadd.f32 %v2775, %v2986
      %v2988 = vpop.f32.mrf.mxu0
      %v2989 = vadd.f32 %v2779, %v2988
      %v2990 = vpop.f32.mrf.mxu0
      %v2991 = vadd.f32 %v2775, %v2990
      %v2992 = vpop.f32.mrf.mxu0
      %v2993 = vadd.f32 %v2779, %v2992
      %2994 = vmatprep.mubr.bf16.mxu0 %v2727
      %2995 = vmatmul.mubr.bf16.gmra.mxu0 %v2726
      %v2996 = vpop.f32.mrf.mxu0
      %v2997 = vadd.f32 %v2775, %v2996
      %v2998 = vpop.f32.mrf.mxu0
      %v2999 = vadd.f32 %v2779, %v2998
      %v3000 = vpop.f32.mrf.mxu0
      %v3001 = vadd.f32 %v2775, %v3000
      %v3002 = vpop.f32.mrf.mxu0
      %v3003 = vadd.f32 %v2779, %v3002
      %3004 = vmatprep.mubr.bf16.mxu0 %v2729
      %3005 = vmatmul.mubr.bf16.gmra.mxu0 %v2728
      %v3006 = vpop.f32.mrf.mxu0
      %v3007 = vadd.f32 %v2775, %v3006
      %v3008 = vpop.f32.mrf.mxu0
      %v3009 = vadd.f32 %v2779, %v3008
      %v3010 = vpop.f32.mrf.mxu0
      %v3011 = vadd.f32 %v2775, %v3010
      %v3012 = vpop.f32.mrf.mxu0
      %v3013 = vadd.f32 %v2779, %v3012
      %3014 = vmatprep.mubr.bf16.mxu0 %v2731
      %3015 = vmatmul.mubr.bf16.gmra.mxu0 %v2730
      %v3016 = vpop.f32.mrf.mxu0
      %v3017 = vadd.f32 %v2775, %v3016
      %v3018 = vpop.f32.mrf.mxu0
      %v3019 = vadd.f32 %v2779, %v3018
      %v3020 = vpop.f32.mrf.mxu0
      %v3021 = vadd.f32 %v2775, %v3020
      %v3022 = vpop.f32.mrf.mxu0
      %v3023 = vadd.f32 %v2779, %v3022
      %3024 = vmatprep.mubr.bf16.mxu0 %v2733
      %3025 = vmatmul.mubr.bf16.gmra.mxu0 %v2732
      %v3026 = vpop.f32.mrf.mxu0
      %v3027 = vadd.f32 %v2775, %v3026
      %v3028 = vpop.f32.mrf.mxu0
      %v3029 = vadd.f32 %v2779, %v3028
      %v3030 = vpop.f32.mrf.mxu0
      %v3031 = vadd.f32 %v2775, %v3030
      %v3032 = vpop.f32.mrf.mxu0
      %v3033 = vadd.f32 %v2779, %v3032
      %3034 = vmatprep.mubr.bf16.mxu0 %v2735
      %3035 = vmatmul.mubr.bf16.gmra.mxu0 %v2734
      %v3036 = vpop.f32.mrf.mxu0
      %v3037 = vadd.f32 %v2775, %v3036
      %v3038 = vpop.f32.mrf.mxu0
      %v3039 = vadd.f32 %v2779, %v3038
      %v3040 = vpop.f32.mrf.mxu0
      %v3041 = vadd.f32 %v2775, %v3040
      %v3042 = vpop.f32.mrf.mxu0
      %v3043 = vadd.f32 %v2779, %v3042
      %3044 = vmatprep.mubr.bf16.mxu0 %v2737
      %3045 = vmatmul.mubr.bf16.gmra.mxu0 %v2736
      %v3046 = vpop.f32.mrf.mxu0
      %v3047 = vadd.f32 %v2775, %v3046
      %v3048 = vpop.f32.mrf.mxu0
      %v3049 = vadd.f32 %v2779, %v3048
      %v3050 = vpop.f32.mrf.mxu0
      %v3051 = vadd.f32 %v2775, %v3050
      %v3052 = vpop.f32.mrf.mxu0
      %v3053 = vadd.f32 %v2779, %v3052
      %3054 = vdwg.mxu0
      %s3055 = smul.u32 16, 2
      %s3056 = smul.addr %s3055, 8
      %s3057 = scalar_lea.vmem %s336, %s3056
      %3058 = vst [vmem:[%s3057] sm:$0xff] %v2977
      %3059 = vst [vmem:[%s3057 + $0x8] sm:$0xff] %v2979
      %3060 = vst [vmem:[%s3057 + $0x10] sm:$0xff] %v2981
      %3061 = vst [vmem:[%s3057 + $0x18] sm:$0xff] %v2983
      %3062 = vst [vmem:[%s3057 + $0x20] sm:$0xff] %v2987
      %3063 = vst [vmem:[%s3057 + $0x28] sm:$0xff] %v2989
      %3064 = vst [vmem:[%s3057 + $0x30] sm:$0xff] %v2991
      %3065 = vst [vmem:[%s3057 + $0x38] sm:$0xff] %v2993
      %3066 = vst [vmem:[%s3057 + $0x40] sm:$0xff] %v2997
      %3067 = vst [vmem:[%s3057 + $0x48] sm:$0xff] %v2999
      %3068 = vst [vmem:[%s3057 + $0x50] sm:$0xff] %v3001
      %3069 = vst [vmem:[%s3057 + $0x58] sm:$0xff] %v3003
      %3070 = vst [vmem:[%s3057 + $0x60] sm:$0xff] %v3007
      %3071 = vst [vmem:[%s3057 + $0x68] sm:$0xff] %v3009
      %3072 = vst [vmem:[%s3057 + $0x70] sm:$0xff] %v3011
      %3073 = vst [vmem:[%s3057 + $0x78] sm:$0xff] %v3013
      %3074 = vst [vmem:[%s3057 + $0x80] sm:$0xff] %v3017
      %3075 = vst [vmem:[%s3057 + $0x88] sm:$0xff] %v3019
      %3076 = vst [vmem:[%s3057 + $0x90] sm:$0xff] %v3021
      %3077 = vst [vmem:[%s3057 + $0x98] sm:$0xff] %v3023
      %3078 = vst [vmem:[%s3057 + $0xa0] sm:$0xff] %v3027
      %3079 = vst [vmem:[%s3057 + $0xa8] sm:$0xff] %v3029
      %3080 = vst [vmem:[%s3057 + $0xb0] sm:$0xff] %v3031
      %3081 = vst [vmem:[%s3057 + $0xb8] sm:$0xff] %v3033
      %3082 = vst [vmem:[%s3057 + $0xc0] sm:$0xff] %v3037
      %3083 = vst [vmem:[%s3057 + $0xc8] sm:$0xff] %v3039
      %3084 = vst [vmem:[%s3057 + $0xd0] sm:$0xff] %v3041
      %3085 = vst [vmem:[%s3057 + $0xd8] sm:$0xff] %v3043
      %3086 = vst [vmem:[%s3057 + $0xe0] sm:$0xff] %v3047
      %3087 = vst [vmem:[%s3057 + $0xe8] sm:$0xff] %v3049
      %3088 = vst [vmem:[%s3057 + $0xf0] sm:$0xff] %v3051
      %3089 = vst [vmem:[%s3057 + $0xf8] sm:$0xff] %v3053
      %s3090 = smul.u32 32, %s20
      %p3091 = scmp.lt.s32.totalorder %s3090, 63
      %s3092 = scalar_select %p3091, %s3090, 63
      %s3093 = smul.addr %s3092, 2
      %s3094 = smul.addr %s3093, 8
      %s3095 = scalar_lea.vmem %s9, %s3094
      // Predicated region
      $region57: #{dnn_audio_forward.1} parent=55 // pred_check
        %p3096 = pneg %p232
      $region58: #{dnn_audio_forward.1} parent=55 // pred_check_branch
        %3098 = sbr.rel (%p3096) target = $region60
      $region59: #{dnn_audio_forward.1} parent=55 // pred_region
        %s3099 = smul.u32 32, %s20
      $region60: #{dnn_audio_forward.1} parent=55 // pred_fallthru
        _
    $region56: #{dnn_audio_forward.1} parent=5 // pred_fallthru
      _
    %p3100 = scmp.le.s32.totalorder 2, %s15
    // Predicated region
    $region61: #{dnn_audio_forward.1} parent=5 // pred_check
      %p3101 = pneg %p3100
    $region62: #{dnn_audio_forward.1} parent=5 // pred_check_branch
      %3103 = sbr.rel (%p3101) target = $region64
    $region63: #{dnn_audio_forward.1} parent=5 // pred_region
      %s3104 = ssub.s32 %s15, 2
      // Predicated region
      $region65: #{dnn_audio_forward.1} parent=63 // pred_check
        %p3105 = pneg %p238
      $region66: #{dnn_audio_forward.1} parent=63 // pred_check_branch
        %3107 = sbr.rel (%p3105) target = $region68
      $region67: #{dnn_audio_forward.1} parent=63 // pred_region
        %s3108 = smul.u32 32, %s21
        %p3109 = scmp.lt.s32.totalorder %s3108, 63
        %s3110 = scalar_select %p3109, %s3108, 63
        %s3111 = smul.addr %s3110, 2
        %s3112 = smul.addr %s3111, 8
        %s3113 = scalar_lea.vmem %s9, %s3112
      $region68: #{dnn_audio_forward.1} parent=63 // pred_fallthru
        _
    $region64: #{dnn_audio_forward.1} parent=5 // pred_fallthru
      _
  $region6: #{dnn_audio_forward.1} parent=0 // loop_footer
    %s19 = sadd.s32 1, %s15
  $region7: #{dnn_audio_forward.1} parent=0 // loop_footer_branch
    %14 = sbr.rel target = $region3
  $region8: #{dnn_audio_forward.1} parent=0 // loop_exit
    _

</llo_original>
